<compile_context>
chip_gen: v5e
topology: v5e:2x2
jax: 0.10.0
libtpu: 0.0.40
codegen_flags: <defaults>
</compile_context>

<pallas_src>
import jax
import jax.numpy as jnp
from jax.experimental import pallas as pl
from jax.experimental.pallas import tpu as pltpu

BN_EPS = 1e-5
CONV_DTYPE = jnp.bfloat16   # MXU operand dtype; accumulation, BN stats, epilogue stay f32


def _pick_tile_h(h, bytes_per_row, budget_bytes):
    """Largest legal tile height (multiple of 8 dividing h, or h itself) within budget."""
    cands = sorted({d for d in range(8, h + 1, 8) if h % d == 0} | {h})
    best = cands[0]
    for d in cands:
        if d * bytes_per_row <= budget_bytes:
            best = d
    return best


def _vmem_limit(working_set_bytes):
    # Comfortable headroom over the double-buffered working set, but never request
    # anything close to v7x's 64 MiB physical VMEM per core.
    return int(min(48 * 1024 * 1024, max(16 * 1024 * 1024, 2 * working_set_bytes)))


def _banded_weights(w_hwio, width):
    """HWIO 3x3 kernel [3,3,Cin,Cout] -> [3, W*Cin, W*Cout] block-banded matrices.

    B[dy][wi*Cin+ci, wo*Cout+co] = w[dy, wi-wo+1, ci, co] if |wi-wo| <= 1 else 0.
    Folds the dx taps and the width "same" padding into the matmul K/N dims, so the
    conv kernel is a handful of large-K MXU matmuls over packed [rows, W*Cin] tiles.
    Entries are exact copies of the original weights (selectors are 0/1 in f32).
    """
    kh, kw, cin, cout = w_hwio.shape
    wi = jnp.arange(width)[:, None]
    wo = jnp.arange(width)[None, :]
    sel = jnp.stack([(wi == wo + dx - 1) for dx in range(kw)], axis=0).astype(jnp.float32)
    b = jnp.einsum("xio,yxcd->yicod", sel, w_hwio.astype(jnp.float32))
    return b.reshape(kh, width * cin, width * cout).astype(CONV_DTYPE)


# ---------------------------------------------------------------------------
# Pass 1: 3x3 conv over a TH-row tile (block-banded matmuls) + per-lane BN stats.
# ---------------------------------------------------------------------------
def _conv3x3_stats_kernel(top_ref, mid_ref, bot_ref, band_ref, y_ref, sum_ref, sq_ref):
    """top/bot: [1, 8, W*Cin] bf16 halo blocks (row 7 / row 0 is the needed neighbour row)
    mid:      [1, TH, W*Cin] bf16 packed rows of this output tile
    band_ref: [3, W*Cin, W*Cout] bf16 banded weights (one per dy; dx + W-padding folded in)
    y_ref:    [1, TH, W*Cout] f32 conv output tile (packed, lane-dense)
    sum/sq:   [1, 1, W*Cout] f32 resident per-batch accumulators (sum, sum of squares)
    """
    i = pl.program_id(1)
    last = pl.num_programs(1) - 1
    th = mid_ref.shape[1]

    mid = mid_ref[0]                              # [TH, W*Cin]
    top_row = top_ref[0, 7:8, :]                  # row i*TH - 1 (valid when i > 0)
    bot_row = bot_ref[0, 0:1, :]                  # row (i+1)*TH (valid when i < last)
    top_row = jnp.where(i == 0, jnp.zeros_like(top_row), top_row)      # image top border
    bot_row = jnp.where(i == last, jnp.zeros_like(bot_row), bot_row)   # image bottom border

    def mm(a, b):
        return jnp.dot(a, b, preferred_element_type=jnp.float32)

    # dy = 1 (centre row): one full-tile matmul, K = W*Cin.
    y_ref[0] = mm(mid, band_ref[1])
    # dy = 0 (row above) / dy = 2 (row below): row-shifted operands, boundary rows from halos.
    y_ref[0, 0:1, :] += mm(top_row, band_ref[0])
    y_ref[0, th - 1:th, :] += mm(bot_row, band_ref[2])
    if th > 1:
        y_ref[0, 1:th, :] += mm(mid[0:th - 1, :], band_ref[0])
        y_ref[0, 0:th - 1, :] += mm(mid[1:th, :], band_ref[2])

    @pl.when(i == 0)
    def _init():
        sum_ref[...] = jnp.zeros_like(sum_ref)
        sq_ref[...] = jnp.zeros_like(sq_ref)

    acc = y_ref[0]                                # [TH, W*Cout] f32
    sum_ref[0] += jnp.sum(acc, axis=0, keepdims=True)
    sq_ref[0] += jnp.sum(acc * acc, axis=0, keepdims=True)


# ---------------------------------------------------------------------------
# Pass 2: folded BatchNorm (scale/bias, tiled to the packed lane layout) + ReLU.
# ---------------------------------------------------------------------------
def _bn_relu_kernel(y_ref, scale_ref, bias_ref, o_ref):
    o_ref[...] = jnp.maximum(
        y_ref[...] * scale_ref[...] + bias_ref[...], 0.0).astype(o_ref.dtype)


def _conv_bn_relu_block(x_packed, w_hwio, gamma, beta, width, out_dtype):
    """One Conv3x3(no bias) + BN(train) + ReLU block on packed activations.

    x_packed: [N, H, W*Cin] bf16 -> returns [N, H, W*Cout] in out_dtype.
    """
    n, h, wcin = x_packed.shape
    w = width
    cin = wcin // w
    cout = w_hwio.shape[-1]
    wcout = w * cout

    bands = _banded_weights(w_hwio, w)                     # [3, W*Cin, W*Cout] bf16

    # --- Pass 1: conv + stats. Grid: (batch [parallel], row tiles [arbitrary/stats]).
    row_bytes1 = wcin * 4 + wcout * 16
    fixed1 = 3 * wcin * wcout * 2 + 64 * wcin + 16 * wcout
    th = _pick_tile_h(h, row_bytes1, 8 * 1024 * 1024)
    nh = h // th
    thb = max(th // 8, 1)
    ws1 = fixed1 + th * row_bytes1

    y, ssum, ssq = pl.pallas_call(
        _conv3x3_stats_kernel,
        grid=(n, nh),
        in_specs=[
            pl.BlockSpec((1, 8, wcin),                      # 8-row block containing row i*TH-1
                         lambda b, i: (b, jnp.maximum(i * thb - 1, 0), 0)),
            pl.BlockSpec((1, th, wcin), lambda b, i: (b, i, 0)),
            pl.BlockSpec((1, 8, wcin),                      # 8-row block containing row (i+1)*TH
                         lambda b, i: (b, jnp.minimum((i + 1) * thb,
                                                      max(h // 8 - 1, 0)), 0)),
            pl.BlockSpec((3, wcin, wcout), lambda b, i: (0, 0, 0)),   # resident weights
        ],
        out_specs=(
            pl.BlockSpec((1, th, wcout), lambda b, i: (b, i, 0)),     # conv output tile
            pl.BlockSpec((1, 1, wcout), lambda b, i: (b, 0, 0)),      # resident per-batch sum
            pl.BlockSpec((1, 1, wcout), lambda b, i: (b, 0, 0)),      # resident per-batch sumsq
        ),
        out_shape=(
            jax.ShapeDtypeStruct((n, h, wcout), jnp.float32),
            jax.ShapeDtypeStruct((n, 1, wcout), jnp.float32),
            jax.ShapeDtypeStruct((n, 1, wcout), jnp.float32),
        ),
        compiler_params=pltpu.CompilerParams(
            dimension_semantics=("parallel", "arbitrary"),
            vmem_limit_bytes=_vmem_limit(ws1)),
    )(x_packed, x_packed, x_packed, bands)

    # --- Fold train-mode BN (biased variance, eps=1e-5) into one scale + bias (tiny JAX).
    m = jnp.float32(n * h * w)
    csum = jnp.sum(ssum, axis=0).reshape(w, cout).sum(axis=0)     # per-channel sum
    csq = jnp.sum(ssq, axis=0).reshape(w, cout).sum(axis=0)       # per-channel sum of squares
    mean = csum / m
    # Note: E[x^2] - mean^2 in f32 (clamped); fine while |mean| is not >> std.
    var = jnp.maximum(csq / m - mean * mean, 0.0)
    inv_std = jax.lax.rsqrt(var + jnp.float32(BN_EPS))
    scale_c = gamma.astype(jnp.float32) * inv_std
    bias_c = beta.astype(jnp.float32) - mean * scale_c
    scale_t = jnp.tile(scale_c, w).reshape(1, 1, wcout)           # tiled to packed lanes
    bias_t = jnp.tile(bias_c, w).reshape(1, 1, wcout)

    # --- Pass 2: elementwise scale/bias + ReLU on the packed, lane-dense layout.
    out_bytes = jnp.dtype(out_dtype).itemsize
    row_bytes2 = wcout * (8 + 2 * out_bytes)
    th2 = _pick_tile_h(h, row_bytes2, 8 * 1024 * 1024)
    ws2 = th2 * row_bytes2 + 2 * wcout * 4

    out = pl.pallas_call(
        _bn_relu_kernel,
        grid=(n, h // th2),
        in_specs=[
            pl.BlockSpec((1, th2, wcout), lambda b, i: (b, i, 0)),
            pl.BlockSpec((1, 1, wcout), lambda b, i: (0, 0, 0)),
            pl.BlockSpec((1, 1, wcout), lambda b, i: (0, 0, 0)),
        ],
        out_specs=pl.BlockSpec((1, th2, wcout), lambda b, i: (b, i, 0)),
        out_shape=jax.ShapeDtypeStruct((n, h, wcout), out_dtype),
        compiler_params=pltpu.CompilerParams(
            dimension_semantics=("parallel", "parallel"),
            vmem_limit_bytes=_vmem_limit(ws2)),
    )(y, scale_t, bias_t)

    return out                                                   # [N, H, W*Cout]


@jax.jit
def double_conv_forward(x_nchw, params):
    """DoubleConv forward.  x: [N, Cin, H, W] (NCHW, PyTorch convention) -> [N, Cout, H, W]."""
    n, cin, h, w = x_nchw.shape
    c2 = params["w2"].shape[-1]
    # NCHW -> NHWC -> packed [N, H, W*Cin] bf16 (packing is a free row-major reshape).
    x = jnp.transpose(x_nchw, (0, 2, 3, 1)).reshape(n, h, w * cin).astype(CONV_DTYPE)
    a1 = _conv_bn_relu_block(x, params["w1"], params["gamma1"], params["beta1"],
                             width=w, out_dtype=CONV_DTYPE)       # bf16, feeds conv2 directly
    y2 = _conv_bn_relu_block(a1, params["w2"], params["gamma2"], params["beta2"],
                             width=w, out_dtype=jnp.float32)
    return jnp.transpose(y2.reshape(n, h, w, c2), (0, 3, 1, 2))


def init_params(key, in_channels, out_channels):
    k1, k2, k3, k4, k5, k6 = jax.random.split(key, 6)
    # Conv weights stored HWIO: [3, 3, Cin, Cout]
    w1 = 0.1 * jax.random.normal(k1, (3, 3, in_channels, out_channels), jnp.float32)
    w2 = 0.1 * jax.random.normal(k2, (3, 3, out_channels, out_channels), jnp.float32)
    gamma1 = 1.0 + 0.1 * jax.random.normal(k3, (out_channels,), jnp.float32)
    beta1 = 0.1 * jax.random.normal(k4, (out_channels,), jnp.float32)
    gamma2 = 1.0 + 0.1 * jax.random.normal(k5, (out_channels,), jnp.float32)
    beta2 = 0.1 * jax.random.normal(k6, (out_channels,), jnp.float32)
    return dict(w1=w1, w2=w2, gamma1=gamma1, beta1=beta1, gamma2=gamma2, beta2=beta2)


def _reference_forward(x_nchw, params):
    """Pure-JAX reference (same bf16 matmul-operand precision, f32 accumulation & BN)."""
    def block(x, w_hwio, gamma, beta):
        y = jax.lax.conv_general_dilated(
            x.astype(CONV_DTYPE), w_hwio.astype(CONV_DTYPE),
            window_strides=(1, 1), padding=((1, 1), (1, 1)),
            dimension_numbers=("NHWC", "HWIO", "NHWC"),
            preferred_element_type=jnp.float32)
        mean = jnp.mean(y, axis=(0, 1, 2), keepdims=True)
        var = jnp.mean((y - mean) ** 2, axis=(0, 1, 2), keepdims=True)
        y = (y - mean) * jax.lax.rsqrt(var + BN_EPS) * gamma + beta
        return jnp.maximum(y, 0.0)

    x = jnp.transpose(x_nchw, (0, 2, 3, 1))
    x = block(x, params["w1"], params["gamma1"], params["beta1"])
    x = block(x, params["w2"], params["gamma2"], params["beta2"])
    return jnp.transpose(x, (0, 3, 1, 2))


if __name__ == "__main__":
    key = jax.random.PRNGKey(0)
    kx, kp = jax.random.split(key)

    N, CIN, COUT, H, W = 2, 4, 8, 16, 16
    x = jax.random.normal(kx, (N, CIN, H, W), jnp.float32)
    params = init_params(kp, CIN, COUT)

    out = jax.block_until_ready(double_conv_forward(x, params))
    assert out.shape == (N, COUT, H, W), out.shape

    ref = _reference_forward(x, params)
    max_err = float(jnp.max(jnp.abs(out - ref)))
    assert jnp.allclose(out, ref, atol=5e-3, rtol=5e-3), max_err

    print("KERNEL_OK")
</pallas_src>

<mosaic_0001>
module attributes {stable_mosaic.version = 11 : i64} {
  func.func @_conv3x3_stats_kernel(%arg0: i32, %arg1: i32, %arg2: memref<1x8x64xbf16, #tpu.memory_space<vmem>>, %arg3: memref<1x16x64xbf16, #tpu.memory_space<vmem>>, %arg4: memref<1x8x64xbf16, #tpu.memory_space<vmem>>, %arg5: memref<3x64x128xbf16, #tpu.memory_space<vmem>>, %arg6: memref<1x16x128xf32, #tpu.memory_space<vmem>>, %arg7: memref<1x1x128xf32, #tpu.memory_space<vmem>>, %arg8: memref<1x1x128xf32, #tpu.memory_space<vmem>>) attributes {dimension_semantics = [#tpu.dimension_semantics<parallel>, #tpu.dimension_semantics<arbitrary>], iteration_bounds = array<i64: 2, 1>, scalar_prefetch = 0 : i64, scratch_operands = 0 : i64, tpu.core_type = #tpu.core_type<tc>, window_params = [{transform_indices = @transform_0, window_bounds = array<i64: 1, 8, 64>}, {transform_indices = @transform_1, window_bounds = array<i64: 1, 16, 64>}, {transform_indices = @transform_2, window_bounds = array<i64: 1, 8, 64>}, {pipeline_mode = #tpu.pipeline_mode<synchronous>, transform_indices = @transform_3, window_bounds = array<i64: 3, 64, 128>}, {transform_indices = @transform_4, window_bounds = array<i64: 1, 16, 128>}, {transform_indices = @transform_5, window_bounds = array<i64: 1, 1, 128>}, {transform_indices = @transform_6, window_bounds = array<i64: 1, 1, 128>}]} {
    %c0 = arith.constant 0 : index
    %c0_0 = arith.constant 0 : index
    %c0_1 = arith.constant 0 : index
    %0 = vector.load %arg3[%c0, %c0_0, %c0_1] : memref<1x16x64xbf16, #tpu.memory_space<vmem>>, vector<1x16x64xbf16>
    %1 = vector.shape_cast %0 : vector<1x16x64xbf16> to vector<16x64xbf16>
    %c0_2 = arith.constant 0 : index
    %c7 = arith.constant 7 : index
    %c0_3 = arith.constant 0 : index
    %2 = vector.load %arg2[%c0_2, %c7, %c0_3] : memref<1x8x64xbf16, #tpu.memory_space<vmem>>, vector<1x1x64xbf16>
    %3 = vector.shape_cast %2 : vector<1x1x64xbf16> to vector<1x64xbf16>
    %c0_4 = arith.constant 0 : index
    %c0_5 = arith.constant 0 : index
    %c0_6 = arith.constant 0 : index
    %4 = vector.load %arg4[%c0_4, %c0_5, %c0_6] : memref<1x8x64xbf16, #tpu.memory_space<vmem>>, vector<1x1x64xbf16>
    %5 = vector.shape_cast %4 : vector<1x1x64xbf16> to vector<1x64xbf16>
    %c0_i32 = arith.constant 0 : i32
    %6 = arith.cmpi eq, %arg1, %c0_i32 : i32
    %cst = arith.constant 0.000000e+00 : bf16
    %7 = vector.broadcast %cst : bf16 to vector<1x64xbf16>
    %8 = arith.select %6, %7, %3 : vector<1x64xbf16>
    %c0_i32_7 = arith.constant 0 : i32
    %9 = arith.cmpi eq, %arg1, %c0_i32_7 : i32
    %cst_8 = arith.constant 0.000000e+00 : bf16
    %10 = vector.broadcast %cst_8 : bf16 to vector<1x64xbf16>
    %11 = arith.select %9, %10, %5 : vector<1x64xbf16>
    %c1 = arith.constant 1 : index
    %c0_9 = arith.constant 0 : index
    %c0_10 = arith.constant 0 : index
    %12 = vector.load %arg5[%c1, %c0_9, %c0_10] : memref<3x64x128xbf16, #tpu.memory_space<vmem>>, vector<1x64x128xbf16>
    %13 = vector.shape_cast %12 : vector<1x64x128xbf16> to vector<64x128xbf16>
    %cst_11 = arith.constant dense<0.000000e+00> : vector<16x128xf32>
    %14 = tpu.matmul %1, %13, %cst_11 {dimension_numbers = #tpu.dot_dimension_numbers<[1], [0], [0], [1], [0, 0, 1, 1], [], []>} : vector<16x64xbf16>, vector<64x128xbf16>, vector<16x128xf32> -> vector<16x128xf32>
    %c0_12 = arith.constant 0 : index
    %c0_13 = arith.constant 0 : index
    %c0_14 = arith.constant 0 : index
    %15 = vector.load %arg6[%c0_12, %c0_13, %c0_14] : memref<1x16x128xf32, #tpu.memory_space<vmem>>, vector<1x16x128xf32>
    %16 = vector.shape_cast %15 : vector<1x16x128xf32> to vector<16x128xf32>
    %17 = vector.shape_cast %14 : vector<16x128xf32> to vector<1x16x128xf32>
    tpu.vector_store %arg6[%c0_12, %c0_13, %c0_14], %17 {strides = array<i32>} : memref<1x16x128xf32, #tpu.memory_space<vmem>>, vector<1x16x128xf32>,
    %c0_15 = arith.constant 0 : index
    %c0_16 = arith.constant 0 : index
    %c0_17 = arith.constant 0 : index
    %18 = vector.load %arg6[%c0_15, %c0_16, %c0_17] : memref<1x16x128xf32, #tpu.memory_space<vmem>>, vector<1x1x128xf32>
    %19 = vector.shape_cast %18 : vector<1x1x128xf32> to vector<1x128xf32>
    %c0_18 = arith.constant 0 : index
    %c0_19 = arith.constant 0 : index
    %c0_20 = arith.constant 0 : index
    %20 = vector.load %arg5[%c0_18, %c0_19, %c0_20] : memref<3x64x128xbf16, #tpu.memory_space<vmem>>, vector<1x64x128xbf16>
    %21 = vector.shape_cast %20 : vector<1x64x128xbf16> to vector<64x128xbf16>
    %cst_21 = arith.constant dense<0.000000e+00> : vector<1x128xf32>
    %22 = tpu.matmul %8, %21, %cst_21 {dimension_numbers = #tpu.dot_dimension_numbers<[1], [0], [0], [1], [0, 0, 1, 1], [], []>} : vector<1x64xbf16>, vector<64x128xbf16>, vector<1x128xf32> -> vector<1x128xf32>
    %23 = arith.addf %19, %22 : vector<1x128xf32>
    %c0_22 = arith.constant 0 : index
    %c0_23 = arith.constant 0 : index
    %c0_24 = arith.constant 0 : index
    %24 = vector.load %arg6[%c0_22, %c0_23, %c0_24] : memref<1x16x128xf32, #tpu.memory_space<vmem>>, vector<1x1x128xf32>
    %25 = vector.shape_cast %24 : vector<1x1x128xf32> to vector<1x128xf32>
    %26 = vector.shape_cast %23 : vector<1x128xf32> to vector<1x1x128xf32>
    tpu.vector_store %arg6[%c0_22, %c0_23, %c0_24], %26 {strides = array<i32>} : memref<1x16x128xf32, #tpu.memory_space<vmem>>, vector<1x1x128xf32>,
    %c0_25 = arith.constant 0 : index
    %c15 = arith.constant 15 : index
    %c0_26 = arith.constant 0 : index
    %27 = vector.load %arg6[%c0_25, %c15, %c0_26] : memref<1x16x128xf32, #tpu.memory_space<vmem>>, vector<1x1x128xf32>
    %28 = vector.shape_cast %27 : vector<1x1x128xf32> to vector<1x128xf32>
    %c2 = arith.constant 2 : index
    %c0_27 = arith.constant 0 : index
    %c0_28 = arith.constant 0 : index
    %29 = vector.load %arg5[%c2, %c0_27, %c0_28] : memref<3x64x128xbf16, #tpu.memory_space<vmem>>, vector<1x64x128xbf16>
    %30 = vector.shape_cast %29 : vector<1x64x128xbf16> to vector<64x128xbf16>
    %cst_29 = arith.constant dense<0.000000e+00> : vector<1x128xf32>
    %31 = tpu.matmul %11, %30, %cst_29 {dimension_numbers = #tpu.dot_dimension_numbers<[1], [0], [0], [1], [0, 0, 1, 1], [], []>} : vector<1x64xbf16>, vector<64x128xbf16>, vector<1x128xf32> -> vector<1x128xf32>
    %32 = arith.addf %28, %31 : vector<1x128xf32>
    %c0_30 = arith.constant 0 : index
    %c15_31 = arith.constant 15 : index
    %c0_32 = arith.constant 0 : index
    %33 = vector.load %arg6[%c0_30, %c15_31, %c0_32] : memref<1x16x128xf32, #tpu.memory_space<vmem>>, vector<1x1x128xf32>
    %34 = vector.shape_cast %33 : vector<1x1x128xf32> to vector<1x128xf32>
    %35 = vector.shape_cast %32 : vector<1x128xf32> to vector<1x1x128xf32>
    tpu.vector_store %arg6[%c0_30, %c15_31, %c0_32], %35 {strides = array<i32>} : memref<1x16x128xf32, #tpu.memory_space<vmem>>, vector<1x1x128xf32>,
    %c0_33 = arith.constant 0 : index
    %c1_34 = arith.constant 1 : index
    %c0_35 = arith.constant 0 : index
    %36 = vector.load %arg6[%c0_33, %c1_34, %c0_35] : memref<1x16x128xf32, #tpu.memory_space<vmem>>, vector<1x15x128xf32>
    %37 = vector.shape_cast %36 : vector<1x15x128xf32> to vector<15x128xf32>
    %38 = vector.extract_strided_slice %1 {offsets = [0, 0], sizes = [15, 64], strides = [1, 1]} : vector<16x64xbf16> to vector<15x64xbf16>
    %c0_36 = arith.constant 0 : index
    %c0_37 = arith.constant 0 : index
    %c0_38 = arith.constant 0 : index
    %39 = vector.load %arg5[%c0_36, %c0_37, %c0_38] : memref<3x64x128xbf16, #tpu.memory_space<vmem>>, vector<1x64x128xbf16>
    %40 = vector.shape_cast %39 : vector<1x64x128xbf16> to vector<64x128xbf16>
    %cst_39 = arith.constant dense<0.000000e+00> : vector<15x128xf32>
    %41 = tpu.matmul %38, %40, %cst_39 {dimension_numbers = #tpu.dot_dimension_numbers<[1], [0], [0], [1], [0, 0, 1, 1], [], []>} : vector<15x64xbf16>, vector<64x128xbf16>, vector<15x128xf32> -> vector<15x128xf32>
    %42 = arith.addf %37, %41 : vector<15x128xf32>
    %c0_40 = arith.constant 0 : index
    %c1_41 = arith.constant 1 : index
    %c0_42 = arith.constant 0 : index
    %43 = vector.load %arg6[%c0_40, %c1_41, %c0_42] : memref<1x16x128xf32, #tpu.memory_space<vmem>>, vector<1x15x128xf32>
    %44 = vector.shape_cast %43 : vector<1x15x128xf32> to vector<15x128xf32>
    %45 = vector.shape_cast %42 : vector<15x128xf32> to vector<1x15x128xf32>
    tpu.vector_store %arg6[%c0_40, %c1_41, %c0_42], %45 {strides = array<i32>} : memref<1x16x128xf32, #tpu.memory_space<vmem>>, vector<1x15x128xf32>,
    %c0_43 = arith.constant 0 : index
    %c0_44 = arith.constant 0 : index
    %c0_45 = arith.constant 0 : index
    %46 = vector.load %arg6[%c0_43, %c0_44, %c0_45] : memref<1x16x128xf32, #tpu.memory_space<vmem>>, vector<1x15x128xf32>
    %47 = vector.shape_cast %46 : vector<1x15x128xf32> to vector<15x128xf32>
    %48 = vector.extract_strided_slice %1 {offsets = [1, 0], sizes = [15, 64], strides = [1, 1]} : vector<16x64xbf16> to vector<15x64xbf16>
    %c2_46 = arith.constant 2 : index
    %c0_47 = arith.constant 0 : index
    %c0_48 = arith.constant 0 : index
    %49 = vector.load %arg5[%c2_46, %c0_47, %c0_48] : memref<3x64x128xbf16, #tpu.memory_space<vmem>>, vector<1x64x128xbf16>
    %50 = vector.shape_cast %49 : vector<1x64x128xbf16> to vector<64x128xbf16>
    %cst_49 = arith.constant dense<0.000000e+00> : vector<15x128xf32>
    %51 = tpu.matmul %48, %50, %cst_49 {dimension_numbers = #tpu.dot_dimension_numbers<[1], [0], [0], [1], [0, 0, 1, 1], [], []>} : vector<15x64xbf16>, vector<64x128xbf16>, vector<15x128xf32> -> vector<15x128xf32>
    %52 = arith.addf %47, %51 : vector<15x128xf32>
    %c0_50 = arith.constant 0 : index
    %c0_51 = arith.constant 0 : index
    %c0_52 = arith.constant 0 : index
    %53 = vector.load %arg6[%c0_50, %c0_51, %c0_52] : memref<1x16x128xf32, #tpu.memory_space<vmem>>, vector<1x15x128xf32>
    %54 = vector.shape_cast %53 : vector<1x15x128xf32> to vector<15x128xf32>
    %55 = vector.shape_cast %52 : vector<15x128xf32> to vector<1x15x128xf32>
    tpu.vector_store %arg6[%c0_50, %c0_51, %c0_52], %55 {strides = array<i32>} : memref<1x16x128xf32, #tpu.memory_space<vmem>>, vector<1x15x128xf32>,
    %c0_i32_53 = arith.constant 0 : i32
    %56 = arith.cmpi eq, %arg1, %c0_i32_53 : i32
    %57 = arith.extui %56 : i1 to i32
    %c0_i32_54 = arith.constant 0 : i32
    %58 = arith.cmpi ne, %57, %c0_i32_54 : i32
    scf.if %58 {
      %cst_72 = arith.constant 0.000000e+00 : f32
      %78 = vector.broadcast %cst_72 : f32 to vector<1x1x128xf32>
      %c0_73 = arith.constant 0 : index
      %c0_74 = arith.constant 0 : index
      %c0_75 = arith.constant 0 : index
      %79 = vector.load %arg7[%c0_73, %c0_74, %c0_75] : memref<1x1x128xf32, #tpu.memory_space<vmem>>, vector<1x1x128xf32>
      tpu.vector_store %arg7[%c0_73, %c0_74, %c0_75], %78 {strides = array<i32>} : memref<1x1x128xf32, #tpu.memory_space<vmem>>, vector<1x1x128xf32>,
      %cst_76 = arith.constant 0.000000e+00 : f32
      %80 = vector.broadcast %cst_76 : f32 to vector<1x1x128xf32>
      %c0_77 = arith.constant 0 : index
      %c0_78 = arith.constant 0 : index
      %c0_79 = arith.constant 0 : index
      %81 = vector.load %arg8[%c0_77, %c0_78, %c0_79] : memref<1x1x128xf32, #tpu.memory_space<vmem>>, vector<1x1x128xf32>
      tpu.vector_store %arg8[%c0_77, %c0_78, %c0_79], %80 {strides = array<i32>} : memref<1x1x128xf32, #tpu.memory_space<vmem>>, vector<1x1x128xf32>,
    } else {
    }
    %c0_55 = arith.constant 0 : index
    %c0_56 = arith.constant 0 : index
    %c0_57 = arith.constant 0 : index
    %59 = vector.load %arg6[%c0_55, %c0_56, %c0_57] : memref<1x16x128xf32, #tpu.memory_space<vmem>>, vector<1x16x128xf32>
    %60 = vector.shape_cast %59 : vector<1x16x128xf32> to vector<16x128xf32>
    %c0_58 = arith.constant 0 : index
    %c0_59 = arith.constant 0 : index
    %c0_60 = arith.constant 0 : index
    %61 = vector.load %arg7[%c0_58, %c0_59, %c0_60] : memref<1x1x128xf32, #tpu.memory_space<vmem>>, vector<1x1x128xf32>
    %62 = vector.shape_cast %61 : vector<1x1x128xf32> to vector<1x128xf32>
    %cst_61 = arith.constant dense<0.000000e+00> : vector<128xf32>
    %63 = vector.multi_reduction <add>, %60, %cst_61 [0] : vector<16x128xf32> to vector<128xf32>
    %64 = vector.shape_cast %63 : vector<128xf32> to vector<1x128xf32>
    %65 = arith.addf %62, %64 : vector<1x128xf32>
    %c0_62 = arith.constant 0 : index
    %c0_63 = arith.constant 0 : index
    %c0_64 = arith.constant 0 : index
    %66 = vector.load %arg7[%c0_62, %c0_63, %c0_64] : memref<1x1x128xf32, #tpu.memory_space<vmem>>, vector<1x1x128xf32>
    %67 = vector.shape_cast %66 : vector<1x1x128xf32> to vector<1x128xf32>
    %68 = vector.shape_cast %65 : vector<1x128xf32> to vector<1x1x128xf32>
    tpu.vector_store %arg7[%c0_62, %c0_63, %c0_64], %68 {strides = array<i32>} : memref<1x1x128xf32, #tpu.memory_space<vmem>>, vector<1x1x128xf32>,
    %c0_65 = arith.constant 0 : index
    %c0_66 = arith.constant 0 : index
    %c0_67 = arith.constant 0 : index
    %69 = vector.load %arg8[%c0_65, %c0_66, %c0_67] : memref<1x1x128xf32, #tpu.memory_space<vmem>>, vector<1x1x128xf32>
    %70 = vector.shape_cast %69 : vector<1x1x128xf32> to vector<1x128xf32>
    %71 = arith.mulf %60, %60 : vector<16x128xf32>
    %cst_68 = arith.constant dense<0.000000e+00> : vector<128xf32>
    %72 = vector.multi_reduction <add>, %71, %cst_68 [0] : vector<16x128xf32> to vector<128xf32>
    %73 = vector.shape_cast %72 : vector<128xf32> to vector<1x128xf32>
    %74 = arith.addf %70, %73 : vector<1x128xf32>
    %c0_69 = arith.constant 0 : index
    %c0_70 = arith.constant 0 : index
    %c0_71 = arith.constant 0 : index
    %75 = vector.load %arg8[%c0_69, %c0_70, %c0_71] : memref<1x1x128xf32, #tpu.memory_space<vmem>>, vector<1x1x128xf32>
    %76 = vector.shape_cast %75 : vector<1x1x128xf32> to vector<1x128xf32>
    %77 = vector.shape_cast %74 : vector<1x128xf32> to vector<1x1x128xf32>
    tpu.vector_store %arg8[%c0_69, %c0_70, %c0_71], %77 {strides = array<i32>} : memref<1x1x128xf32, #tpu.memory_space<vmem>>, vector<1x1x128xf32>,
    return
  }
  func.func @transform_0(%arg0: i32, %arg1: i32) -> (i32, i32, i32) {
    %c2_i32 = arith.constant 2 : i32
    %0 = arith.muli %arg1, %c2_i32 : i32
    %c1_i32 = arith.constant 1 : i32
    %1 = arith.subi %0, %c1_i32 : i32
    %c0_i32 = arith.constant 0 : i32
    %2 = arith.maxsi %1, %c0_i32 : i32
    %c0_i32_0 = arith.constant 0 : i32
    %c0_i32_1 = arith.constant 0 : i32
    return %arg0, %2, %c0_i32_0 : i32, i32, i32
  }
  func.func @transform_1(%arg0: i32, %arg1: i32) -> (i32, i32, i32) {
    %c0_i32 = arith.constant 0 : i32
    %c0_i32_0 = arith.constant 0 : i32
    return %arg0, %arg1, %c0_i32 : i32, i32, i32
  }
  func.func @transform_2(%arg0: i32, %arg1: i32) -> (i32, i32, i32) {
    %c1_i32 = arith.constant 1 : i32
    %0 = arith.addi %arg1, %c1_i32 : i32
    %c2_i32 = arith.constant 2 : i32
    %1 = arith.muli %0, %c2_i32 : i32
    %c1_i32_0 = arith.constant 1 : i32
    %2 = arith.minsi %1, %c1_i32_0 : i32
    %c0_i32 = arith.constant 0 : i32
    %c0_i32_1 = arith.constant 0 : i32
    return %arg0, %2, %c0_i32 : i32, i32, i32
  }
  func.func @transform_3(%arg0: i32, %arg1: i32) -> (i32, i32, i32) {
    %c0_i32 = arith.constant 0 : i32
    %c0_i32_0 = arith.constant 0 : i32
    %c0_i32_1 = arith.constant 0 : i32
    %c0_i32_2 = arith.constant 0 : i32
    return %c0_i32, %c0_i32_0, %c0_i32_1 : i32, i32, i32
  }
  func.func @transform_4(%arg0: i32, %arg1: i32) -> (i32, i32, i32) {
    %c0_i32 = arith.constant 0 : i32
    %c0_i32_0 = arith.constant 0 : i32
    return %arg0, %arg1, %c0_i32 : i32, i32, i32
  }
  func.func @transform_5(%arg0: i32, %arg1: i32) -> (i32, i32, i32) {
    %c0_i32 = arith.constant 0 : i32
    %c0_i32_0 = arith.constant 0 : i32
    %c0_i32_1 = arith.constant 0 : i32
    return %arg0, %c0_i32, %c0_i32_0 : i32, i32, i32
  }
  func.func @transform_6(%arg0: i32, %arg1: i32) -> (i32, i32, i32) {
    %c0_i32 = arith.constant 0 : i32
    %c0_i32_0 = arith.constant 0 : i32
    %c0_i32_1 = arith.constant 0 : i32
    return %arg0, %c0_i32, %c0_i32_0 : i32, i32, i32
  }
}

module attributes {stable_mosaic.version = 11 : i64} {
  func.func @_bn_relu_kernel(%arg0: i32, %arg1: i32, %arg2: memref<1x16x128xf32, #tpu.memory_space<vmem>>, %arg3: memref<1x1x128xf32, #tpu.memory_space<vmem>>, %arg4: memref<1x1x128xf32, #tpu.memory_space<vmem>>, %arg5: memref<1x16x128xbf16, #tpu.memory_space<vmem>>) attributes {dimension_semantics = [#tpu.dimension_semantics<parallel>, #tpu.dimension_semantics<parallel>], iteration_bounds = array<i64: 2, 1>, scalar_prefetch = 0 : i64, scratch_operands = 0 : i64, tpu.core_type = #tpu.core_type<tc>, window_params = [{transform_indices = @transform_0, window_bounds = array<i64: 1, 16, 128>}, {pipeline_mode = #tpu.pipeline_mode<synchronous>, transform_indices = @transform_1, window_bounds = array<i64: 1, 1, 128>}, {pipeline_mode = #tpu.pipeline_mode<synchronous>, transform_indices = @transform_2, window_bounds = array<i64: 1, 1, 128>}, {transform_indices = @transform_3, window_bounds = array<i64: 1, 16, 128>}]} {
    %c0 = arith.constant 0 : index
    %c0_0 = arith.constant 0 : index
    %c0_1 = arith.constant 0 : index
    %0 = vector.load %arg2[%c0, %c0_0, %c0_1] : memref<1x16x128xf32, #tpu.memory_space<vmem>>, vector<1x16x128xf32>
    %c0_2 = arith.constant 0 : index
    %c0_3 = arith.constant 0 : index
    %c0_4 = arith.constant 0 : index
    %1 = vector.load %arg3[%c0_2, %c0_3, %c0_4] : memref<1x1x128xf32, #tpu.memory_space<vmem>>, vector<1x1x128xf32>
    %2 = vector.broadcast %1 : vector<1x1x128xf32> to vector<1x16x128xf32>
    %3 = arith.mulf %0, %2 : vector<1x16x128xf32>
    %c0_5 = arith.constant 0 : index
    %c0_6 = arith.constant 0 : index
    %c0_7 = arith.constant 0 : index
    %4 = vector.load %arg4[%c0_5, %c0_6, %c0_7] : memref<1x1x128xf32, #tpu.memory_space<vmem>>, vector<1x1x128xf32>
    %5 = vector.broadcast %4 : vector<1x1x128xf32> to vector<1x16x128xf32>
    %6 = arith.addf %3, %5 : vector<1x16x128xf32>
    %cst = arith.constant 0.000000e+00 : f32
    %7 = vector.broadcast %cst : f32 to vector<1x16x128xf32>
    %8 = arith.maximumf %6, %7 : vector<1x16x128xf32>
    %9 = arith.truncf %8 : vector<1x16x128xf32> to vector<1x16x128xbf16>
    %c0_8 = arith.constant 0 : index
    %c0_9 = arith.constant 0 : index
    %c0_10 = arith.constant 0 : index
    %10 = vector.load %arg5[%c0_8, %c0_9, %c0_10] : memref<1x16x128xbf16, #tpu.memory_space<vmem>>, vector<1x16x128xbf16>
    tpu.vector_store %arg5[%c0_8, %c0_9, %c0_10], %9 {strides = array<i32>} : memref<1x16x128xbf16, #tpu.memory_space<vmem>>, vector<1x16x128xbf16>,
    return
  }
  func.func @transform_0(%arg0: i32, %arg1: i32) -> (i32, i32, i32) {
    %c0_i32 = arith.constant 0 : i32
    %c0_i32_0 = arith.constant 0 : i32
    return %arg0, %arg1, %c0_i32 : i32, i32, i32
  }
  func.func @transform_1(%arg0: i32, %arg1: i32) -> (i32, i32, i32) {
    %c0_i32 = arith.constant 0 : i32
    %c0_i32_0 = arith.constant 0 : i32
    %c0_i32_1 = arith.constant 0 : i32
    %c0_i32_2 = arith.constant 0 : i32
    return %c0_i32, %c0_i32_0, %c0_i32_1 : i32, i32, i32
  }
  func.func @transform_2(%arg0: i32, %arg1: i32) -> (i32, i32, i32) {
    %c0_i32 = arith.constant 0 : i32
    %c0_i32_0 = arith.constant 0 : i32
    %c0_i32_1 = arith.constant 0 : i32
    %c0_i32_2 = arith.constant 0 : i32
    return %c0_i32, %c0_i32_0, %c0_i32_1 : i32, i32, i32
  }
  func.func @transform_3(%arg0: i32, %arg1: i32) -> (i32, i32, i32) {
    %c0_i32 = arith.constant 0 : i32
    %c0_i32_0 = arith.constant 0 : i32
    return %arg0, %arg1, %c0_i32 : i32, i32, i32
  }
}

module attributes {stable_mosaic.version = 11 : i64} {
  func.func @_conv3x3_stats_kernel(%arg0: i32, %arg1: i32, %arg2: memref<1x8x128xbf16, #tpu.memory_space<vmem>>, %arg3: memref<1x16x128xbf16, #tpu.memory_space<vmem>>, %arg4: memref<1x8x128xbf16, #tpu.memory_space<vmem>>, %arg5: memref<3x128x128xbf16, #tpu.memory_space<vmem>>, %arg6: memref<1x16x128xf32, #tpu.memory_space<vmem>>, %arg7: memref<1x1x128xf32, #tpu.memory_space<vmem>>, %arg8: memref<1x1x128xf32, #tpu.memory_space<vmem>>) attributes {dimension_semantics = [#tpu.dimension_semantics<parallel>, #tpu.dimension_semantics<arbitrary>], iteration_bounds = array<i64: 2, 1>, scalar_prefetch = 0 : i64, scratch_operands = 0 : i64, tpu.core_type = #tpu.core_type<tc>, window_params = [{transform_indices = @transform_0, window_bounds = array<i64: 1, 8, 128>}, {transform_indices = @transform_1, window_bounds = array<i64: 1, 16, 128>}, {transform_indices = @transform_2, window_bounds = array<i64: 1, 8, 128>}, {pipeline_mode = #tpu.pipeline_mode<synchronous>, transform_indices = @transform_3, window_bounds = array<i64: 3, 128, 128>}, {transform_indices = @transform_4, window_bounds = array<i64: 1, 16, 128>}, {transform_indices = @transform_5, window_bounds = array<i64: 1, 1, 128>}, {transform_indices = @transform_6, window_bounds = array<i64: 1, 1, 128>}]} {
    %c0 = arith.constant 0 : index
    %c0_0 = arith.constant 0 : index
    %c0_1 = arith.constant 0 : index
    %0 = vector.load %arg3[%c0, %c0_0, %c0_1] : memref<1x16x128xbf16, #tpu.memory_space<vmem>>, vector<1x16x128xbf16>
    %1 = vector.shape_cast %0 : vector<1x16x128xbf16> to vector<16x128xbf16>
    %c0_2 = arith.constant 0 : index
    %c7 = arith.constant 7 : index
    %c0_3 = arith.constant 0 : index
    %2 = vector.load %arg2[%c0_2, %c7, %c0_3] : memref<1x8x128xbf16, #tpu.memory_space<vmem>>, vector<1x1x128xbf16>
    %3 = vector.shape_cast %2 : vector<1x1x128xbf16> to vector<1x128xbf16>
    %c0_4 = arith.constant 0 : index
    %c0_5 = arith.constant 0 : index
    %c0_6 = arith.constant 0 : index
    %4 = vector.load %arg4[%c0_4, %c0_5, %c0_6] : memref<1x8x128xbf16, #tpu.memory_space<vmem>>, vector<1x1x128xbf16>
    %5 = vector.shape_cast %4 : vector<1x1x128xbf16> to vector<1x128xbf16>
    %c0_i32 = arith.constant 0 : i32
    %6 = arith.cmpi eq, %arg1, %c0_i32 : i32
    %cst = arith.constant 0.000000e+00 : bf16
    %7 = vector.broadcast %cst : bf16 to vector<1x128xbf16>
    %8 = arith.select %6, %7, %3 : vector<1x128xbf16>
    %c0_i32_7 = arith.constant 0 : i32
    %9 = arith.cmpi eq, %arg1, %c0_i32_7 : i32
    %cst_8 = arith.constant 0.000000e+00 : bf16
    %10 = vector.broadcast %cst_8 : bf16 to vector<1x128xbf16>
    %11 = arith.select %9, %10, %5 : vector<1x128xbf16>
    %c1 = arith.constant 1 : index
    %c0_9 = arith.constant 0 : index
    %c0_10 = arith.constant 0 : index
    %12 = vector.load %arg5[%c1, %c0_9, %c0_10] : memref<3x128x128xbf16, #tpu.memory_space<vmem>>, vector<1x128x128xbf16>
    %13 = vector.shape_cast %12 : vector<1x128x128xbf16> to vector<128x128xbf16>
    %cst_11 = arith.constant dense<0.000000e+00> : vector<16x128xf32>
    %14 = tpu.matmul %1, %13, %cst_11 {dimension_numbers = #tpu.dot_dimension_numbers<[1], [0], [0], [1], [0, 0, 1, 1], [], []>} : vector<16x128xbf16>, vector<128x128xbf16>, vector<16x128xf32> -> vector<16x128xf32>
    %c0_12 = arith.constant 0 : index
    %c0_13 = arith.constant 0 : index
    %c0_14 = arith.constant 0 : index
    %15 = vector.load %arg6[%c0_12, %c0_13, %c0_14] : memref<1x16x128xf32, #tpu.memory_space<vmem>>, vector<1x16x128xf32>
    %16 = vector.shape_cast %15 : vector<1x16x128xf32> to vector<16x128xf32>
    %17 = vector.shape_cast %14 : vector<16x128xf32> to vector<1x16x128xf32>
    tpu.vector_store %arg6[%c0_12, %c0_13, %c0_14], %17 {strides = array<i32>} : memref<1x16x128xf32, #tpu.memory_space<vmem>>, vector<1x16x128xf32>,
    %c0_15 = arith.constant 0 : index
    %c0_16 = arith.constant 0 : index
    %c0_17 = arith.constant 0 : index
    %18 = vector.load %arg6[%c0_15, %c0_16, %c0_17] : memref<1x16x128xf32, #tpu.memory_space<vmem>>, vector<1x1x128xf32>
    %19 = vector.shape_cast %18 : vector<1x1x128xf32> to vector<1x128xf32>
    %c0_18 = arith.constant 0 : index
    %c0_19 = arith.constant 0 : index
    %c0_20 = arith.constant 0 : index
    %20 = vector.load %arg5[%c0_18, %c0_19, %c0_20] : memref<3x128x128xbf16, #tpu.memory_space<vmem>>, vector<1x128x128xbf16>
    %21 = vector.shape_cast %20 : vector<1x128x128xbf16> to vector<128x128xbf16>
    %cst_21 = arith.constant dense<0.000000e+00> : vector<1x128xf32>
    %22 = tpu.matmul %8, %21, %cst_21 {dimension_numbers = #tpu.dot_dimension_numbers<[1], [0], [0], [1], [0, 0, 1, 1], [], []>} : vector<1x128xbf16>, vector<128x128xbf16>, vector<1x128xf32> -> vector<1x128xf32>
    %23 = arith.addf %19, %22 : vector<1x128xf32>
    %c0_22 = arith.constant 0 : index
    %c0_23 = arith.constant 0 : index
    %c0_24 = arith.constant 0 : index
    %24 = vector.load %arg6[%c0_22, %c0_23, %c0_24] : memref<1x16x128xf32, #tpu.memory_space<vmem>>, vector<1x1x128xf32>
    %25 = vector.shape_cast %24 : vector<1x1x128xf32> to vector<1x128xf32>
    %26 = vector.shape_cast %23 : vector<1x128xf32> to vector<1x1x128xf32>
    tpu.vector_store %arg6[%c0_22, %c0_23, %c0_24], %26 {strides = array<i32>} : memref<1x16x128xf32, #tpu.memory_space<vmem>>, vector<1x1x128xf32>,
    %c0_25 = arith.constant 0 : index
    %c15 = arith.constant 15 : index
    %c0_26 = arith.constant 0 : index
    %27 = vector.load %arg6[%c0_25, %c15, %c0_26] : memref<1x16x128xf32, #tpu.memory_space<vmem>>, vector<1x1x128xf32>
    %28 = vector.shape_cast %27 : vector<1x1x128xf32> to vector<1x128xf32>
    %c2 = arith.constant 2 : index
    %c0_27 = arith.constant 0 : index
    %c0_28 = arith.constant 0 : index
    %29 = vector.load %arg5[%c2, %c0_27, %c0_28] : memref<3x128x128xbf16, #tpu.memory_space<vmem>>, vector<1x128x128xbf16>
    %30 = vector.shape_cast %29 : vector<1x128x128xbf16> to vector<128x128xbf16>
    %cst_29 = arith.constant dense<0.000000e+00> : vector<1x128xf32>
    %31 = tpu.matmul %11, %30, %cst_29 {dimension_numbers = #tpu.dot_dimension_numbers<[1], [0], [0], [1], [0, 0, 1, 1], [], []>} : vector<1x128xbf16>, vector<128x128xbf16>, vector<1x128xf32> -> vector<1x128xf32>
    %32 = arith.addf %28, %31 : vector<1x128xf32>
    %c0_30 = arith.constant 0 : index
    %c15_31 = arith.constant 15 : index
    %c0_32 = arith.constant 0 : index
    %33 = vector.load %arg6[%c0_30, %c15_31, %c0_32] : memref<1x16x128xf32, #tpu.memory_space<vmem>>, vector<1x1x128xf32>
    %34 = vector.shape_cast %33 : vector<1x1x128xf32> to vector<1x128xf32>
    %35 = vector.shape_cast %32 : vector<1x128xf32> to vector<1x1x128xf32>
    tpu.vector_store %arg6[%c0_30, %c15_31, %c0_32], %35 {strides = array<i32>} : memref<1x16x128xf32, #tpu.memory_space<vmem>>, vector<1x1x128xf32>,
    %c0_33 = arith.constant 0 : index
    %c1_34 = arith.constant 1 : index
    %c0_35 = arith.constant 0 : index
    %36 = vector.load %arg6[%c0_33, %c1_34, %c0_35] : memref<1x16x128xf32, #tpu.memory_space<vmem>>, vector<1x15x128xf32>
    %37 = vector.shape_cast %36 : vector<1x15x128xf32> to vector<15x128xf32>
    %38 = vector.extract_strided_slice %1 {offsets = [0, 0], sizes = [15, 128], strides = [1, 1]} : vector<16x128xbf16> to vector<15x128xbf16>
    %c0_36 = arith.constant 0 : index
    %c0_37 = arith.constant 0 : index
    %c0_38 = arith.constant 0 : index
    %39 = vector.load %arg5[%c0_36, %c0_37, %c0_38] : memref<3x128x128xbf16, #tpu.memory_space<vmem>>, vector<1x128x128xbf16>
    %40 = vector.shape_cast %39 : vector<1x128x128xbf16> to vector<128x128xbf16>
    %cst_39 = arith.constant dense<0.000000e+00> : vector<15x128xf32>
    %41 = tpu.matmul %38, %40, %cst_39 {dimension_numbers = #tpu.dot_dimension_numbers<[1], [0], [0], [1], [0, 0, 1, 1], [], []>} : vector<15x128xbf16>, vector<128x128xbf16>, vector<15x128xf32> -> vector<15x128xf32>
    %42 = arith.addf %37, %41 : vector<15x128xf32>
    %c0_40 = arith.constant 0 : index
    %c1_41 = arith.constant 1 : index
    %c0_42 = arith.constant 0 : index
    %43 = vector.load %arg6[%c0_40, %c1_41, %c0_42] : memref<1x16x128xf32, #tpu.memory_space<vmem>>, vector<1x15x128xf32>
    %44 = vector.shape_cast %43 : vector<1x15x128xf32> to vector<15x128xf32>
    %45 = vector.shape_cast %42 : vector<15x128xf32> to vector<1x15x128xf32>
    tpu.vector_store %arg6[%c0_40, %c1_41, %c0_42], %45 {strides = array<i32>} : memref<1x16x128xf32, #tpu.memory_space<vmem>>, vector<1x15x128xf32>,
    %c0_43 = arith.constant 0 : index
    %c0_44 = arith.constant 0 : index
    %c0_45 = arith.constant 0 : index
    %46 = vector.load %arg6[%c0_43, %c0_44, %c0_45] : memref<1x16x128xf32, #tpu.memory_space<vmem>>, vector<1x15x128xf32>
    %47 = vector.shape_cast %46 : vector<1x15x128xf32> to vector<15x128xf32>
    %48 = vector.extract_strided_slice %1 {offsets = [1, 0], sizes = [15, 128], strides = [1, 1]} : vector<16x128xbf16> to vector<15x128xbf16>
    %c2_46 = arith.constant 2 : index
    %c0_47 = arith.constant 0 : index
    %c0_48 = arith.constant 0 : index
    %49 = vector.load %arg5[%c2_46, %c0_47, %c0_48] : memref<3x128x128xbf16, #tpu.memory_space<vmem>>, vector<1x128x128xbf16>
    %50 = vector.shape_cast %49 : vector<1x128x128xbf16> to vector<128x128xbf16>
    %cst_49 = arith.constant dense<0.000000e+00> : vector<15x128xf32>
    %51 = tpu.matmul %48, %50, %cst_49 {dimension_numbers = #tpu.dot_dimension_numbers<[1], [0], [0], [1], [0, 0, 1, 1], [], []>} : vector<15x128xbf16>, vector<128x128xbf16>, vector<15x128xf32> -> vector<15x128xf32>
    %52 = arith.addf %47, %51 : vector<15x128xf32>
    %c0_50 = arith.constant 0 : index
    %c0_51 = arith.constant 0 : index
    %c0_52 = arith.constant 0 : index
    %53 = vector.load %arg6[%c0_50, %c0_51, %c0_52] : memref<1x16x128xf32, #tpu.memory_space<vmem>>, vector<1x15x128xf32>
    %54 = vector.shape_cast %53 : vector<1x15x128xf32> to vector<15x128xf32>
    %55 = vector.shape_cast %52 : vector<15x128xf32> to vector<1x15x128xf32>
    tpu.vector_store %arg6[%c0_50, %c0_51, %c0_52], %55 {strides = array<i32>} : memref<1x16x128xf32, #tpu.memory_space<vmem>>, vector<1x15x128xf32>,
    %c0_i32_53 = arith.constant 0 : i32
    %56 = arith.cmpi eq, %arg1, %c0_i32_53 : i32
    %57 = arith.extui %56 : i1 to i32
    %c0_i32_54 = arith.constant 0 : i32
    %58 = arith.cmpi ne, %57, %c0_i32_54 : i32
    scf.if %58 {
      %cst_72 = arith.constant 0.000000e+00 : f32
      %78 = vector.broadcast %cst_72 : f32 to vector<1x1x128xf32>
      %c0_73 = arith.constant 0 : index
      %c0_74 = arith.constant 0 : index
      %c0_75 = arith.constant 0 : index
      %79 = vector.load %arg7[%c0_73, %c0_74, %c0_75] : memref<1x1x128xf32, #tpu.memory_space<vmem>>, vector<1x1x128xf32>
      tpu.vector_store %arg7[%c0_73, %c0_74, %c0_75], %78 {strides = array<i32>} : memref<1x1x128xf32, #tpu.memory_space<vmem>>, vector<1x1x128xf32>,
      %cst_76 = arith.constant 0.000000e+00 : f32
      %80 = vector.broadcast %cst_76 : f32 to vector<1x1x128xf32>
      %c0_77 = arith.constant 0 : index
      %c0_78 = arith.constant 0 : index
      %c0_79 = arith.constant 0 : index
      %81 = vector.load %arg8[%c0_77, %c0_78, %c0_79] : memref<1x1x128xf32, #tpu.memory_space<vmem>>, vector<1x1x128xf32>
      tpu.vector_store %arg8[%c0_77, %c0_78, %c0_79], %80 {strides = array<i32>} : memref<1x1x128xf32, #tpu.memory_space<vmem>>, vector<1x1x128xf32>,
    } else {
    }
    %c0_55 = arith.constant 0 : index
    %c0_56 = arith.constant 0 : index
    %c0_57 = arith.constant 0 : index
    %59 = vector.load %arg6[%c0_55, %c0_56, %c0_57] : memref<1x16x128xf32, #tpu.memory_space<vmem>>, vector<1x16x128xf32>
    %60 = vector.shape_cast %59 : vector<1x16x128xf32> to vector<16x128xf32>
    %c0_58 = arith.constant 0 : index
    %c0_59 = arith.constant 0 : index
    %c0_60 = arith.constant 0 : index
    %61 = vector.load %arg7[%c0_58, %c0_59, %c0_60] : memref<1x1x128xf32, #tpu.memory_space<vmem>>, vector<1x1x128xf32>
    %62 = vector.shape_cast %61 : vector<1x1x128xf32> to vector<1x128xf32>
    %cst_61 = arith.constant dense<0.000000e+00> : vector<128xf32>
    %63 = vector.multi_reduction <add>, %60, %cst_61 [0] : vector<16x128xf32> to vector<128xf32>
    %64 = vector.shape_cast %63 : vector<128xf32> to vector<1x128xf32>
    %65 = arith.addf %62, %64 : vector<1x128xf32>
    %c0_62 = arith.constant 0 : index
    %c0_63 = arith.constant 0 : index
    %c0_64 = arith.constant 0 : index
    %66 = vector.load %arg7[%c0_62, %c0_63, %c0_64] : memref<1x1x128xf32, #tpu.memory_space<vmem>>, vector<1x1x128xf32>
    %67 = vector.shape_cast %66 : vector<1x1x128xf32> to vector<1x128xf32>
    %68 = vector.shape_cast %65 : vector<1x128xf32> to vector<1x1x128xf32>
    tpu.vector_store %arg7[%c0_62, %c0_63, %c0_64], %68 {strides = array<i32>} : memref<1x1x128xf32, #tpu.memory_space<vmem>>, vector<1x1x128xf32>,
    %c0_65 = arith.constant 0 : index
    %c0_66 = arith.constant 0 : index
    %c0_67 = arith.constant 0 : index
    %69 = vector.load %arg8[%c0_65, %c0_66, %c0_67] : memref<1x1x128xf32, #tpu.memory_space<vmem>>, vector<1x1x128xf32>
    %70 = vector.shape_cast %69 : vector<1x1x128xf32> to vector<1x128xf32>
    %71 = arith.mulf %60, %60 : vector<16x128xf32>
    %cst_68 = arith.constant dense<0.000000e+00> : vector<128xf32>
    %72 = vector.multi_reduction <add>, %71, %cst_68 [0] : vector<16x128xf32> to vector<128xf32>
    %73 = vector.shape_cast %72 : vector<128xf32> to vector<1x128xf32>
    %74 = arith.addf %70, %73 : vector<1x128xf32>
    %c0_69 = arith.constant 0 : index
    %c0_70 = arith.constant 0 : index
    %c0_71 = arith.constant 0 : index
    %75 = vector.load %arg8[%c0_69, %c0_70, %c0_71] : memref<1x1x128xf32, #tpu.memory_space<vmem>>, vector<1x1x128xf32>
    %76 = vector.shape_cast %75 : vector<1x1x128xf32> to vector<1x128xf32>
    %77 = vector.shape_cast %74 : vector<1x128xf32> to vector<1x1x128xf32>
    tpu.vector_store %arg8[%c0_69, %c0_70, %c0_71], %77 {strides = array<i32>} : memref<1x1x128xf32, #tpu.memory_space<vmem>>, vector<1x1x128xf32>,
    return
  }
  func.func @transform_0(%arg0: i32, %arg1: i32) -> (i32, i32, i32) {
    %c2_i32 = arith.constant 2 : i32
    %0 = arith.muli %arg1, %c2_i32 : i32
    %c1_i32 = arith.constant 1 : i32
    %1 = arith.subi %0, %c1_i32 : i32
    %c0_i32 = arith.constant 0 : i32
    %2 = arith.maxsi %1, %c0_i32 : i32
    %c0_i32_0 = arith.constant 0 : i32
    %c0_i32_1 = arith.constant 0 : i32
    return %arg0, %2, %c0_i32_0 : i32, i32, i32
  }
  func.func @transform_1(%arg0: i32, %arg1: i32) -> (i32, i32, i32) {
    %c0_i32 = arith.constant 0 : i32
    %c0_i32_0 = arith.constant 0 : i32
    return %arg0, %arg1, %c0_i32 : i32, i32, i32
  }
  func.func @transform_2(%arg0: i32, %arg1: i32) -> (i32, i32, i32) {
    %c1_i32 = arith.constant 1 : i32
    %0 = arith.addi %arg1, %c1_i32 : i32
    %c2_i32 = arith.constant 2 : i32
    %1 = arith.muli %0, %c2_i32 : i32
    %c1_i32_0 = arith.constant 1 : i32
    %2 = arith.minsi %1, %c1_i32_0 : i32
    %c0_i32 = arith.constant 0 : i32
    %c0_i32_1 = arith.constant 0 : i32
    return %arg0, %2, %c0_i32 : i32, i32, i32
  }
  func.func @transform_3(%arg0: i32, %arg1: i32) -> (i32, i32, i32) {
    %c0_i32 = arith.constant 0 : i32
    %c0_i32_0 = arith.constant 0 : i32
    %c0_i32_1 = arith.constant 0 : i32
    %c0_i32_2 = arith.constant 0 : i32
    return %c0_i32, %c0_i32_0, %c0_i32_1 : i32, i32, i32
  }
  func.func @transform_4(%arg0: i32, %arg1: i32) -> (i32, i32, i32) {
    %c0_i32 = arith.constant 0 : i32
    %c0_i32_0 = arith.constant 0 : i32
    return %arg0, %arg1, %c0_i32 : i32, i32, i32
  }
  func.func @transform_5(%arg0: i32, %arg1: i32) -> (i32, i32, i32) {
    %c0_i32 = arith.constant 0 : i32
    %c0_i32_0 = arith.constant 0 : i32
    %c0_i32_1 = arith.constant 0 : i32
    return %arg0, %c0_i32, %c0_i32_0 : i32, i32, i32
  }
  func.func @transform_6(%arg0: i32, %arg1: i32) -> (i32, i32, i32) {
    %c0_i32 = arith.constant 0 : i32
    %c0_i32_0 = arith.constant 0 : i32
    %c0_i32_1 = arith.constant 0 : i32
    return %arg0, %c0_i32, %c0_i32_0 : i32, i32, i32
  }
}

module attributes {stable_mosaic.version = 11 : i64} {
  func.func @_bn_relu_kernel(%arg0: i32, %arg1: i32, %arg2: memref<1x16x128xf32, #tpu.memory_space<vmem>>, %arg3: memref<1x1x128xf32, #tpu.memory_space<vmem>>, %arg4: memref<1x1x128xf32, #tpu.memory_space<vmem>>, %arg5: memref<1x16x128xf32, #tpu.memory_space<vmem>>) attributes {dimension_semantics = [#tpu.dimension_semantics<parallel>, #tpu.dimension_semantics<parallel>], iteration_bounds = array<i64: 2, 1>, scalar_prefetch = 0 : i64, scratch_operands = 0 : i64, tpu.core_type = #tpu.core_type<tc>, window_params = [{transform_indices = @transform_0, window_bounds = array<i64: 1, 16, 128>}, {pipeline_mode = #tpu.pipeline_mode<synchronous>, transform_indices = @transform_1, window_bounds = array<i64: 1, 1, 128>}, {pipeline_mode = #tpu.pipeline_mode<synchronous>, transform_indices = @transform_2, window_bounds = array<i64: 1, 1, 128>}, {transform_indices = @transform_3, window_bounds = array<i64: 1, 16, 128>}]} {
    %c0 = arith.constant 0 : index
    %c0_0 = arith.constant 0 : index
    %c0_1 = arith.constant 0 : index
    %0 = vector.load %arg2[%c0, %c0_0, %c0_1] : memref<1x16x128xf32, #tpu.memory_space<vmem>>, vector<1x16x128xf32>
    %c0_2 = arith.constant 0 : index
    %c0_3 = arith.constant 0 : index
    %c0_4 = arith.constant 0 : index
    %1 = vector.load %arg3[%c0_2, %c0_3, %c0_4] : memref<1x1x128xf32, #tpu.memory_space<vmem>>, vector<1x1x128xf32>
    %2 = vector.broadcast %1 : vector<1x1x128xf32> to vector<1x16x128xf32>
    %3 = arith.mulf %0, %2 : vector<1x16x128xf32>
    %c0_5 = arith.constant 0 : index
    %c0_6 = arith.constant 0 : index
    %c0_7 = arith.constant 0 : index
    %4 = vector.load %arg4[%c0_5, %c0_6, %c0_7] : memref<1x1x128xf32, #tpu.memory_space<vmem>>, vector<1x1x128xf32>
    %5 = vector.broadcast %4 : vector<1x1x128xf32> to vector<1x16x128xf32>
    %6 = arith.addf %3, %5 : vector<1x16x128xf32>
    %cst = arith.constant 0.000000e+00 : f32
    %7 = vector.broadcast %cst : f32 to vector<1x16x128xf32>
    %8 = arith.maximumf %6, %7 : vector<1x16x128xf32>
    %c0_8 = arith.constant 0 : index
    %c0_9 = arith.constant 0 : index
    %c0_10 = arith.constant 0 : index
    %9 = vector.load %arg5[%c0_8, %c0_9, %c0_10] : memref<1x16x128xf32, #tpu.memory_space<vmem>>, vector<1x16x128xf32>
    tpu.vector_store %arg5[%c0_8, %c0_9, %c0_10], %8 {strides = array<i32>} : memref<1x16x128xf32, #tpu.memory_space<vmem>>, vector<1x16x128xf32>,
    return
  }
  func.func @transform_0(%arg0: i32, %arg1: i32) -> (i32, i32, i32) {
    %c0_i32 = arith.constant 0 : i32
    %c0_i32_0 = arith.constant 0 : i32
    return %arg0, %arg1, %c0_i32 : i32, i32, i32
  }
  func.func @transform_1(%arg0: i32, %arg1: i32) -> (i32, i32, i32) {
    %c0_i32 = arith.constant 0 : i32
    %c0_i32_0 = arith.constant 0 : i32
    %c0_i32_1 = arith.constant 0 : i32
    %c0_i32_2 = arith.constant 0 : i32
    return %c0_i32, %c0_i32_0, %c0_i32_1 : i32, i32, i32
  }
  func.func @transform_2(%arg0: i32, %arg1: i32) -> (i32, i32, i32) {
    %c0_i32 = arith.constant 0 : i32
    %c0_i32_0 = arith.constant 0 : i32
    %c0_i32_1 = arith.constant 0 : i32
    %c0_i32_2 = arith.constant 0 : i32
    return %c0_i32, %c0_i32_0, %c0_i32_1 : i32, i32, i32
  }
  func.func @transform_3(%arg0: i32, %arg1: i32) -> (i32, i32, i32) {
    %c0_i32 = arith.constant 0 : i32
    %c0_i32_0 = arith.constant 0 : i32
    return %arg0, %arg1, %c0_i32 : i32, i32, i32
  }
}

</mosaic_0001>

<llo_original>
// kernel: double_conv_forward.4
$region0: #{double_conv_forward.4}
  #allocation0 [shape = 'u32[]', space=smem, size = 0x4, offset = 0x4, fixed_abs, tag = 'smem constant byte address 0x4 - core index']
  #allocation1 [shape = 'u32[72,128]{1,0:T(1,128)}', space=vmem, size = 0x9000, scoped, tag = 'internal scratch']
  %s0 = inlined_call_operand.vmem [shape: bf16[2,16,64], index: 0, kind: input, shape index: {}, may-alias: {0,1,2}]
  %s1 = inlined_call_operand.vmem [shape: bf16[2,16,64], index: 1, kind: input, shape index: {}, may-alias: {0,1,2}]
  %s2 = inlined_call_operand.vmem [shape: bf16[2,16,64], index: 2, kind: input, shape index: {}, may-alias: {0,1,2}]
  %s3 = inlined_call_operand.vmem [shape: bf16[3,64,128], index: 3, kind: input, shape index: {}]
  %s4 = inlined_call_operand.vmem [shape: f32[2,16,128], index: 4, kind: output, shape index: {0}]
  %s5 = inlined_call_operand.vmem [shape: f32[2,1,128], index: 5, kind: output, shape index: {1}]
  %s6 = inlined_call_operand.vmem [shape: f32[2,1,128], index: 6, kind: output, shape index: {2}]
  %7 = xla_tuple %s4, %s5, %s6
  %s8 = sld [smem:[#allocation0]]
  $region69: #{double_conv_forward.4} parent=0
    _
  %s10 = ssub.s32 1, %s8
  %s11 = scalar_select 0, %s10, %s8
  loop: start=0, step=1, limit=4
  $region2: #{double_conv_forward.4} parent=0 // loop_pre_header
    _
  $region3: #{double_conv_forward.4} parent=0 // loop_header
    %s13 = sphi 0, %s17
    %p14 = scmp.ge.s32.totalorder %s13, 4
    %s20 = sphi 0, %s32
    %s21 = sphi 0, %s28
    %s22 = sphi 0, %s20
    %s23 = sphi 0, %s21
    %s24 = sphi 0, %s22
    %s25 = sphi 0, %s23
    %s45 = sphi 0, %s47
    %s48 = sphi 0, %s45
    %s49 = sphi 0, %s48
    %s65 = sphi 0, %s49
    %s73 = sphi 0, %s75
    %s76 = sphi 0, %s73
    %s77 = sphi 0, %s76
    %s93 = sphi 0, %s77
    %s109 = sphi 0, %s111
    %s112 = sphi 0, %s109
    %s113 = sphi 0, %s112
    %s129 = sphi 0, %s113
    %s133 = sphi 0, %s133
    %s135 = sphi 0, %s133
    %s136 = sphi 0, %s135
    %s150 = sphi 0, %s136
    %s158 = sphi 0, %s160
    %s161 = sphi 0, %s158
    %s162 = sphi 0, %s161
    %s178 = sphi 0, %s162
    %s184 = sphi 0, %s186
    %s187 = sphi 0, %s184
    %s188 = sphi 0, %s187
    %s204 = sphi 0, %s188
    %s210 = sphi 0, %s212
    %s213 = sphi 0, %s210
    %s214 = sphi 0, %s213
    %s230 = sphi 0, %s214
  $region4: #{double_conv_forward.4} parent=0 // loop_header_branch
    %16 = sbr.rel (%p14) target = $region8
  $region5: #{double_conv_forward.4} parent=0 // loop_body
    %s18 = ssub.s32 %s13, 1
    %s19 = ssub.s32 %s13, 2
    %s26 = sadd.s32 1, %s21
    %p27 = scmp.ge.s32.totalorder %s26, 1
    %s28 = scalar_select %p27, 0, %s26
    %s29 = sadd.s32 1, %s20
    %s30 = scalar_select %p27, %s29, %s20
    %p31 = scmp.ge.s32.totalorder %s30, 2
    %s32 = scalar_select %p31, 0, %s30
    %s33 = smul.u32 %s21, 2
    %s34 = ssub.s32 %s33, 1
    %p35 = scmp.gt.s32.totalorder %s34, 0
    %s36 = scalar_select %p35, %s34, 0
    %s37 = smul.u32 %s28, 2
    %s38 = ssub.s32 %s37, 1
    %p39 = scmp.gt.s32.totalorder %s38, 0
    %s40 = scalar_select %p39, %s38, 0
    %s41 = ssub.s32 %s20, %s32
    %s42 = ssub.s32 %s36, %s40
    %s43 = sor.u32 %s41, %s42
    %p44 = scmp.eq.s32.totalorder %s43, 0
    %s46 = sadd.s32 %s45, 1
    %s47 = scalar_select %p44, %s45, %s46
    %p50 = pneg %p44
    %p51 = scmp.eq.s32.totalorder %s13, 1
    %p52 = por %p50, %p51
    %p53 = scmp.ne.s32.totalorder %s45, %s48
    %p54 = scmp.eq.s32.totalorder %s13, 0
    %p55 = por %p53, %p54
    %p56 = scmp.ne.s32.totalorder %s45, %s48
    %p57 = scmp.eq.s32.totalorder %s18, 1
    %p58 = por %p56, %p57
    %p59 = scmp.ne.s32.totalorder %s48, %s49
    %p60 = scmp.eq.s32.totalorder %s18, 0
    %p61 = por %p59, %p60
    %p62 = scmp.ne.s32.totalorder %s48, %s49
    %p63 = scmp.eq.s32.totalorder %s19, 1
    %p64 = por %p62, %p63
    %p66 = scmp.ne.s32.totalorder %s49, %s65
    %p67 = scmp.eq.s32.totalorder %s19, 0
    %p68 = por %p66, %p67
    %s69 = ssub.s32 %s20, %s32
    %s70 = ssub.s32 %s21, %s28
    %s71 = sor.u32 %s69, %s70
    %p72 = scmp.eq.s32.totalorder %s71, 0
    %s74 = sadd.s32 %s73, 1
    %s75 = scalar_select %p72, %s73, %s74
    %p78 = pneg %p72
    %p79 = scmp.eq.s32.totalorder %s13, 1
    %p80 = por %p78, %p79
    %p81 = scmp.ne.s32.totalorder %s73, %s76
    %p82 = scmp.eq.s32.totalorder %s13, 0
    %p83 = por %p81, %p82
    %p84 = scmp.ne.s32.totalorder %s73, %s76
    %p85 = scmp.eq.s32.totalorder %s18, 1
    %p86 = por %p84, %p85
    %p87 = scmp.ne.s32.totalorder %s76, %s77
    %p88 = scmp.eq.s32.totalorder %s18, 0
    %p89 = por %p87, %p88
    %p90 = scmp.ne.s32.totalorder %s76, %s77
    %p91 = scmp.eq.s32.totalorder %s19, 1
    %p92 = por %p90, %p91
    %p94 = scmp.ne.s32.totalorder %s77, %s93
    %p95 = scmp.eq.s32.totalorder %s19, 0
    %p96 = por %p94, %p95
    %s97 = sadd.s32 %s21, 1
    %s98 = smul.u32 %s97, 2
    %p99 = scmp.lt.s32.totalorder %s98, 1
    %s100 = scalar_select %p99, %s98, 1
    %s101 = sadd.s32 %s28, 1
    %s102 = smul.u32 %s101, 2
    %p103 = scmp.lt.s32.totalorder %s102, 1
    %s104 = scalar_select %p103, %s102, 1
    %s105 = ssub.s32 %s20, %s32
    %s106 = ssub.s32 %s100, %s104
    %s107 = sor.u32 %s105, %s106
    %p108 = scmp.eq.s32.totalorder %s107, 0
    %s110 = sadd.s32 %s109, 1
    %s111 = scalar_select %p108, %s109, %s110
    %p114 = pneg %p108
    %p115 = scmp.eq.s32.totalorder %s13, 1
    %p116 = por %p114, %p115
    %p117 = scmp.ne.s32.totalorder %s109, %s112
    %p118 = scmp.eq.s32.totalorder %s13, 0
    %p119 = por %p117, %p118
    %p120 = scmp.ne.s32.totalorder %s109, %s112
    %p121 = scmp.eq.s32.totalorder %s18, 1
    %p122 = por %p120, %p121
    %p123 = scmp.ne.s32.totalorder %s112, %s113
    %p124 = scmp.eq.s32.totalorder %s18, 0
    %p125 = por %p123, %p124
    %p126 = scmp.ne.s32.totalorder %s112, %s113
    %p127 = scmp.eq.s32.totalorder %s19, 1
    %p128 = por %p126, %p127
    %p130 = scmp.ne.s32.totalorder %s113, %s129
    %p131 = scmp.eq.s32.totalorder %s19, 0
    %p132 = por %p130, %p131
    %s134 = sadd.s32 %s133, 1
    %p137 = scmp.eq.s32.totalorder %s13, 1
    %p138 = scmp.ne.s32.totalorder %s133, %s135
    %p139 = scmp.eq.s32.totalorder %s13, 0
    %p140 = por %p138, %p139
    %p141 = scmp.ne.s32.totalorder %s133, %s135
    %p142 = scmp.eq.s32.totalorder %s18, 1
    %p143 = por %p141, %p142
    %p144 = scmp.ne.s32.totalorder %s135, %s136
    %p145 = scmp.eq.s32.totalorder %s18, 0
    %p146 = por %p144, %p145
    %p147 = scmp.ne.s32.totalorder %s135, %s136
    %p148 = scmp.eq.s32.totalorder %s19, 1
    %p149 = por %p147, %p148
    %p151 = scmp.ne.s32.totalorder %s136, %s150
    %p152 = scmp.eq.s32.totalorder %s19, 0
    %p153 = por %p151, %p152
    %s154 = ssub.s32 %s20, %s32
    %s155 = ssub.s32 %s21, %s28
    %s156 = sor.u32 %s154, %s155
    %p157 = scmp.eq.s32.totalorder %s156, 0
    %s159 = sadd.s32 %s158, 1
    %s160 = scalar_select %p157, %s158, %s159
    %p163 = pneg %p157
    %p164 = scmp.eq.s32.totalorder %s13, 1
    %p165 = por %p163, %p164
    %p166 = scmp.ne.s32.totalorder %s158, %s161
    %p167 = scmp.eq.s32.totalorder %s13, 0
    %p168 = por %p166, %p167
    %p169 = scmp.ne.s32.totalorder %s158, %s161
    %p170 = scmp.eq.s32.totalorder %s18, 1
    %p171 = por %p169, %p170
    %p172 = scmp.ne.s32.totalorder %s161, %s162
    %p173 = scmp.eq.s32.totalorder %s18, 0
    %p174 = por %p172, %p173
    %p175 = scmp.ne.s32.totalorder %s161, %s162
    %p176 = scmp.eq.s32.totalorder %s19, 1
    %p177 = por %p175, %p176
    %p179 = scmp.ne.s32.totalorder %s162, %s178
    %p180 = scmp.eq.s32.totalorder %s19, 0
    %p181 = por %p179, %p180
    %s182 = ssub.s32 %s20, %s32
    %p183 = scmp.eq.s32.totalorder %s182, 0
    %s185 = sadd.s32 %s184, 1
    %s186 = scalar_select %p183, %s184, %s185
    %p189 = pneg %p183
    %p190 = scmp.eq.s32.totalorder %s13, 1
    %p191 = por %p189, %p190
    %p192 = scmp.ne.s32.totalorder %s184, %s187
    %p193 = scmp.eq.s32.totalorder %s13, 0
    %p194 = por %p192, %p193
    %p195 = scmp.ne.s32.totalorder %s184, %s187
    %p196 = scmp.eq.s32.totalorder %s18, 1
    %p197 = por %p195, %p196
    %p198 = scmp.ne.s32.totalorder %s187, %s188
    %p199 = scmp.eq.s32.totalorder %s18, 0
    %p200 = por %p198, %p199
    %p201 = scmp.ne.s32.totalorder %s187, %s188
    %p202 = scmp.eq.s32.totalorder %s19, 1
    %p203 = por %p201, %p202
    %p205 = scmp.ne.s32.totalorder %s188, %s204
    %p206 = scmp.eq.s32.totalorder %s19, 0
    %p207 = por %p205, %p206
    %s208 = ssub.s32 %s20, %s32
    %p209 = scmp.eq.s32.totalorder %s208, 0
    %s211 = sadd.s32 %s210, 1
    %s212 = scalar_select %p209, %s210, %s211
    %p215 = pneg %p209
    %p216 = scmp.eq.s32.totalorder %s13, 1
    %p217 = por %p215, %p216
    %p218 = scmp.ne.s32.totalorder %s210, %s213
    %p219 = scmp.eq.s32.totalorder %s13, 0
    %p220 = por %p218, %p219
    %p221 = scmp.ne.s32.totalorder %s210, %s213
    %p222 = scmp.eq.s32.totalorder %s18, 1
    %p223 = por %p221, %p222
    %p224 = scmp.ne.s32.totalorder %s213, %s214
    %p225 = scmp.eq.s32.totalorder %s18, 0
    %p226 = por %p224, %p225
    %p227 = scmp.ne.s32.totalorder %s213, %s214
    %p228 = scmp.eq.s32.totalorder %s19, 1
    %p229 = por %p227, %p228
    %p231 = scmp.ne.s32.totalorder %s214, %s230
    %p232 = scmp.eq.s32.totalorder %s19, 0
    %p233 = por %p231, %p232
    %p234 = scmp.le.s32.totalorder 1, %s13
    %p235 = scmp.lt.s32.totalorder %s13, 3
    %p236 = pnand %p234, %p235
    %p237 = pneg %p236
    // Predicated region
    $region9: #{double_conv_forward.4} parent=5 // pred_check
      _
    $region10: #{double_conv_forward.4} parent=5 // pred_check_branch
      %239 = sbr.rel (%p236) target = $region12
    $region11: #{double_conv_forward.4} parent=5 // pred_region
      %s240 = ssub.s32 %s13, 1
      // Predicated region
      $region13: #{double_conv_forward.4} parent=11 // pred_check
        %p241 = pneg %p146
      $region14: #{double_conv_forward.4} parent=11 // pred_check_branch
        %243 = sbr.rel (%p241) target = $region16
      $region15: #{double_conv_forward.4} parent=11 // pred_region
        _
      $region16: #{double_conv_forward.4} parent=11 // pred_fallthru
        _
    $region12: #{double_conv_forward.4} parent=5 // pred_fallthru
      _
    %p244 = scmp.lt.s32.totalorder %s13, 2
    // Predicated region
    $region17: #{double_conv_forward.4} parent=5 // pred_check
      %p245 = pneg %p244
    $region18: #{double_conv_forward.4} parent=5 // pred_check_branch
      %247 = sbr.rel (%p245) target = $region20
    $region19: #{double_conv_forward.4} parent=5 // pred_region
      // Predicated region
      $region21: #{double_conv_forward.4} parent=19 // pred_check
        %p248 = pneg %p55
      $region22: #{double_conv_forward.4} parent=19 // pred_check_branch
        %250 = sbr.rel (%p248) target = $region24
      $region23: #{double_conv_forward.4} parent=19 // pred_region
        %s251 = smul.u32 %s21, 2
        %s252 = ssub.s32 %s251, 1
        %p253 = scmp.gt.s32.totalorder %s252, 0
        %s254 = scalar_select %p253, %s252, 0
        %p255 = scmp.lt.s32.totalorder %s20, 1
        %s256 = scalar_select %p255, %s20, 1
        %p257 = scmp.lt.s32.totalorder %s254, 1
        %s258 = scalar_select %p257, %s254, 1
        %s259 = smul.addr %s256, 2
        %s260 = sadd.s32 %s258, %s259
        %s261 = smul.addr %s260, 4
        %s262 = scalar_lea.vmem %s0, %s261
        %s263 = smul.u32 %s21, 2
        %s264 = ssub.s32 %s263, 1
        %p265 = scmp.gt.s32.totalorder %s264, 0
        %s266 = scalar_select %p265, %s264, 0
      $region24: #{double_conv_forward.4} parent=19 // pred_fallthru
        _
      // Predicated region
      $region25: #{double_conv_forward.4} parent=19 // pred_check
        %p267 = pneg %p83
      $region26: #{double_conv_forward.4} parent=19 // pred_check_branch
        %269 = sbr.rel (%p267) target = $region28
      $region27: #{double_conv_forward.4} parent=19 // pred_region
        %s270 = smul.u32 2, %s21
        %p271 = scmp.lt.s32.totalorder %s20, 1
        %s272 = scalar_select %p271, %s20, 1
        %p273 = scmp.lt.s32.totalorder %s270, 1
        %s274 = scalar_select %p273, %s270, 1
        %s275 = smul.addr %s272, 2
        %s276 = sadd.s32 %s274, %s275
        %s277 = smul.addr %s276, 4
        %s278 = scalar_lea.vmem %s1, %s277
        %s279 = smul.u32 2, %s21
      $region28: #{double_conv_forward.4} parent=19 // pred_fallthru
        _
      // Predicated region
      $region29: #{double_conv_forward.4} parent=19 // pred_check
        %p280 = pneg %p119
      $region30: #{double_conv_forward.4} parent=19 // pred_check_branch
        %282 = sbr.rel (%p280) target = $region32
      $region31: #{double_conv_forward.4} parent=19 // pred_region
        %s283 = sadd.s32 %s21, 1
        %s284 = smul.u32 %s283, 2
        %p285 = scmp.lt.s32.totalorder %s284, 1
        %s286 = scalar_select %p285, %s284, 1
        %p287 = scmp.lt.s32.totalorder %s20, 1
        %s288 = scalar_select %p287, %s20, 1
        %p289 = scmp.lt.s32.totalorder %s286, 1
        %s290 = scalar_select %p289, %s286, 1
        %s291 = smul.addr %s288, 2
        %s292 = sadd.s32 %s290, %s291
        %s293 = smul.addr %s292, 4
        %s294 = scalar_lea.vmem %s2, %s293
        %s295 = sadd.s32 %s21, 1
        %s296 = smul.u32 %s295, 2
        %p297 = scmp.lt.s32.totalorder %s296, 1
        %s298 = scalar_select %p297, %s296, 1
      $region32: #{double_conv_forward.4} parent=19 // pred_fallthru
        _
    $region20: #{double_conv_forward.4} parent=5 // pred_fallthru
      _
    %p299 = scmp.le.s32.totalorder 1, %s13
    %p300 = scmp.lt.s32.totalorder %s13, 3
    %p301 = pnand %p299, %p300
    %p302 = pneg %p301
    // Predicated region
    $region33: #{double_conv_forward.4} parent=5 // pred_check
      _
    $region34: #{double_conv_forward.4} parent=5 // pred_check_branch
      %304 = sbr.rel (%p301) target = $region36
    $region35: #{double_conv_forward.4} parent=5 // pred_region
      %s305 = ssub.s32 %s13, 1
      %s306 = smul.u32 %s23, 2
      %s307 = ssub.s32 %s306, 1
      %p308 = scmp.gt.s32.totalorder %s307, 0
      %s309 = scalar_select %p308, %s307, 0
      %p310 = scmp.lt.s32.totalorder %s22, 1
      %s311 = scalar_select %p310, %s22, 1
      %p312 = scmp.lt.s32.totalorder %s309, 1
      %s313 = scalar_select %p312, %s309, 1
      %s314 = smul.addr %s311, 2
      %s315 = sadd.s32 %s313, %s314
      %s316 = smul.addr %s315, 4
      %s317 = scalar_lea.vmem %s0, %s316
      %p318 = pneg %p61
      %p319 = pneg %p58
      %s320 = smul.u32 2, %s23
      %p321 = scmp.lt.s32.totalorder %s22, 1
      %s322 = scalar_select %p321, %s22, 1
      %p323 = scmp.lt.s32.totalorder %s320, 1
      %s324 = scalar_select %p323, %s320, 1
      %s325 = smul.addr %s322, 2
      %s326 = sadd.s32 %s324, %s325
      %s327 = smul.addr %s326, 4
      %s328 = scalar_lea.vmem %s1, %s327
      %p329 = pneg %p89
      %p330 = pneg %p86
      %s331 = sadd.s32 %s23, 1
      %s332 = smul.u32 %s331, 2
      %p333 = scmp.lt.s32.totalorder %s332, 1
      %s334 = scalar_select %p333, %s332, 1
      %p335 = scmp.lt.s32.totalorder %s22, 1
      %s336 = scalar_select %p335, %s22, 1
      %p337 = scmp.lt.s32.totalorder %s334, 1
      %s338 = scalar_select %p337, %s334, 1
      %s339 = smul.addr %s336, 2
      %s340 = sadd.s32 %s338, %s339
      %s341 = smul.addr %s340, 4
      %s342 = scalar_lea.vmem %s2, %s341
      %p343 = pneg %p125
      %p344 = pneg %p122
      %p345 = pneg %p146
      %p346 = pneg %p143
      %p347 = pneg %p174
      %p348 = pneg %p171
      %s349 = smul.u32 2, %s23
      %p350 = scmp.lt.s32.totalorder %s22, 1
      %s351 = scalar_select %p350, %s22, 1
      %p352 = scmp.lt.s32.totalorder %s349, 1
      %s353 = scalar_select %p352, %s349, 1
      %s354 = smul.addr %s351, 2
      %s355 = sadd.s32 %s353, %s354
      %s356 = smul.addr %s355, 8
      %s357 = scalar_lea.vmem %s4, %s356
      %p358 = pneg %p200
      %p359 = pneg %p197
      %p360 = scmp.lt.s32.totalorder %s22, 1
      %s361 = scalar_select %p360, %s22, 1
      %s362 = scalar_lea.vmem %s5, %s361
      %p363 = pneg %p226
      %p364 = pneg %p223
      %p365 = scmp.lt.s32.totalorder %s22, 1
      %s366 = scalar_select %p365, %s22, 1
      %s367 = scalar_lea.vmem %s6, %s366
      %s368 = smul.u32 %s23, 2
      %s369 = ssub.s32 %s368, 1
      %p370 = scmp.gt.s32.totalorder %s369, 0
      %s371 = scalar_select %p370, %s369, 0
      %p372 = scmp.lt.s32.totalorder %s22, 1
      %s373 = scalar_select %p372, %s22, 1
      %p374 = scmp.lt.s32.totalorder %s371, 1
      %s375 = scalar_select %p374, %s371, 1
      %s376 = smul.addr %s373, 2
      %s377 = sadd.s32 %s375, %s376
      %s378 = smul.addr %s377, 4
      %s379 = scalar_lea.vmem %s0, %s378
      %s380 = smul.u32 %s23, 2
      %s381 = ssub.s32 %s380, 1
      %p382 = scmp.gt.s32.totalorder %s381, 0
      %s383 = scalar_select %p382, %s381, 0
      %s384 = smul.u32 2, %s23
      %p385 = scmp.lt.s32.totalorder %s22, 1
      %s386 = scalar_select %p385, %s22, 1
      %p387 = scmp.lt.s32.totalorder %s384, 1
      %s388 = scalar_select %p387, %s384, 1
      %s389 = smul.addr %s386, 2
      %s390 = sadd.s32 %s388, %s389
      %s391 = smul.addr %s390, 4
      %s392 = scalar_lea.vmem %s1, %s391
      %s393 = smul.u32 2, %s23
      %s394 = sadd.s32 %s23, 1
      %s395 = smul.u32 %s394, 2
      %p396 = scmp.lt.s32.totalorder %s395, 1
      %s397 = scalar_select %p396, %s395, 1
      %p398 = scmp.lt.s32.totalorder %s22, 1
      %s399 = scalar_select %p398, %s22, 1
      %p400 = scmp.lt.s32.totalorder %s397, 1
      %s401 = scalar_select %p400, %s397, 1
      %s402 = smul.addr %s399, 2
      %s403 = sadd.s32 %s401, %s402
      %s404 = smul.addr %s403, 4
      %s405 = scalar_lea.vmem %s2, %s404
      %s406 = sadd.s32 %s23, 1
      %s407 = smul.u32 %s406, 2
      %p408 = scmp.lt.s32.totalorder %s407, 1
      %s409 = scalar_select %p408, %s407, 1
      %s410 = smul.u32 2, %s23
      %p411 = scmp.lt.s32.totalorder %s22, 1
      %s412 = scalar_select %p411, %s22, 1
      %p413 = scmp.lt.s32.totalorder %s410, 1
      %s414 = scalar_select %p413, %s410, 1
      %s415 = smul.addr %s412, 2
      %s416 = sadd.s32 %s414, %s415
      %s417 = smul.addr %s416, 8
      %s418 = scalar_lea.vmem %s4, %s417
      %s419 = smul.u32 2, %s23
      %p420 = scmp.lt.s32.totalorder %s22, 1
      %s421 = scalar_select %p420, %s22, 1
      %s422 = scalar_lea.vmem %s5, %s421
      %p423 = scmp.lt.s32.totalorder %s22, 1
      %s424 = scalar_select %p423, %s22, 1
      %s425 = scalar_lea.vmem %s6, %s424
      %v427 = vld [vmem:[%s392] sm:$0xf]
      %v428 = vld [vmem:[%s392 + $0x4] sm:$0xf]
      %v429 = vld [vmem:[%s379] sm:$0x8]
      %v430 = vld [vmem:[%s405] sm:$0x1]
      %p431 = scmp.eq.s32.totalorder %s23, 0
      %s432 = scalar_select %p431, 1, 0
      %v433 = vstv %s432
      %vm434 = vcmp.eq.s32.totalorder %v433, 1
      %v435 = vsel %vm434, 0, %v429
      %v436 = vsel %vm434, 0, %v430
      %s437 = scalar_lea.vmem %s3, 32
      %v438 = vld [vmem:[%s437] sm:$0xf]
      %v439 = vld [vmem:[%s437 + $0x4] sm:$0xf]
      %v440 = vld [vmem:[%s437 + $0x8] sm:$0xf]
      %v441 = vld [vmem:[%s437 + $0xc] sm:$0xf]
      %v442 = vld [vmem:[%s437 + $0x10] sm:$0xf]
      %v443 = vld [vmem:[%s437 + $0x14] sm:$0xf]
      %v444 = vld [vmem:[%s437 + $0x18] sm:$0xf]
      %v445 = vld [vmem:[%s437 + $0x1c] sm:$0xf]
      %v448 = vunpack.c.l.b16 %v427
      %v449 = vunpack.c.l.b16 %v428
      %v450 = vpack.c.b16 %v449, %v448
      %v459 = vunpack.c.l.b16 %v438
      %v460 = vunpack.c.l.b16 %v439
      %v461 = vunpack.c.l.b16 %v440
      %v462 = vunpack.c.l.b16 %v441
      %v463 = vunpack.c.l.b16 %v442
      %v464 = vunpack.c.l.b16 %v443
      %v465 = vunpack.c.l.b16 %v444
      %v466 = vunpack.c.l.b16 %v445
      %v467 = vpack.c.b16 %v460, %v459
      %v468 = vpack.c.b16 %v462, %v461
      %v469 = vpack.c.b16 %v464, %v463
      %v470 = vpack.c.b16 %v466, %v465
      %vm475 = vcmask 523264
      %v477 = vsel %vm475, %v450, 0
      %479 = vmatpush.bf16.msra.mxu0 0
      %480 = vmatpush.bf16.msra.mxu0 0
      %481 = vmatpush.bf16.msra.mxu0 0
      %482 = vmatpush.bf16.msra.mxu0 0
      %483 = vmatpush.bf16.msra.mxu0 %v470
      %484 = vmatpush.bf16.msra.mxu0 %v469
      %485 = vmatpush.bf16.msra.mxu0 %v468
      %486 = vmatpush.bf16.msra.mxu0 %v467
      %487 = vmatmul.bf16.gmra.mxu0 %v477
      %v488 = vpop.f32.mrf.mxu0
      %v489 = vadd.f32 0.0, %v488
      %v490 = vpop.f32.mrf.mxu0
      %v491 = vadd.f32 0.0, %v490
      %492 = vdwg.mxu0
      %493 = vst [vmem:[%s418] sm:$0xff] %v489
      %494 = vst [vmem:[%s418 + $0x8] sm:$0xff] %v491
      %v495 = vld [vmem:[%s418] sm:$0x1]
      %v496 = vld [vmem:[%s3] sm:$0xf]
      %v497 = vld [vmem:[%s3 + $0x4] sm:$0xf]
      %v498 = vld [vmem:[%s3 + $0x8] sm:$0xf]
      %v499 = vld [vmem:[%s3 + $0xc] sm:$0xf]
      %v500 = vld [vmem:[%s3 + $0x10] sm:$0xf]
      %v501 = vld [vmem:[%s3 + $0x14] sm:$0xf]
      %v502 = vld [vmem:[%s3 + $0x18] sm:$0xf]
      %v503 = vld [vmem:[%s3 + $0x1c] sm:$0xf]
      %v505 = vunpack.c.l.b16 %v435
      %v506 = vpack.c.b16 %v505, %v505
      %v508 = vshrl.u32 %v506, 16
      %v510 = vrot.slane %v508, 3
      %v519 = vunpack.c.l.b16 %v496
      %v520 = vunpack.c.l.b16 %v497
      %v521 = vunpack.c.l.b16 %v498
      %v522 = vunpack.c.l.b16 %v499
      %v523 = vunpack.c.l.b16 %v500
      %v524 = vunpack.c.l.b16 %v501
      %v525 = vunpack.c.l.b16 %v502
      %v526 = vunpack.c.l.b16 %v503
      %v527 = vpack.c.b16 %v520, %v519
      %v528 = vpack.c.b16 %v522, %v521
      %v529 = vpack.c.b16 %v524, %v523
      %v530 = vpack.c.b16 %v526, %v525
      %v536 = vsel %vm475, %v510, 0
      %538 = vmatpush.bf16.msra.mxu0 0
      %539 = vmatpush.bf16.msra.mxu0 0
      %540 = vmatpush.bf16.msra.mxu0 0
      %541 = vmatpush.bf16.msra.mxu0 0
      %542 = vmatpush.bf16.msra.mxu0 %v530
      %543 = vmatpush.bf16.msra.mxu0 %v529
      %544 = vmatpush.bf16.msra.mxu0 %v528
      %545 = vmatpush.bf16.msra.mxu0 %v527
      %546 = vmatmul.bf16.gmra.mxu0 %v536
      %v547 = vpop.f32.mrf.mxu0
      %v548 = vadd.f32 0.0, %v547
      %v549 = vpop.f32.mrf.mxu0
      %550 = vdwg.mxu0
      %v551 = vadd.f32 %v495, %v548
      %552 = vst [vmem:[%s418] sm:$0x1] %v551
      %v553 = vld [vmem:[%s418 + $0xf] sm:$0x1]
      %s554 = scalar_lea.vmem %s3, 64
      %v555 = vld [vmem:[%s554] sm:$0xf]
      %v556 = vld [vmem:[%s554 + $0x4] sm:$0xf]
      %v557 = vld [vmem:[%s554 + $0x8] sm:$0xf]
      %v558 = vld [vmem:[%s554 + $0xc] sm:$0xf]
      %v559 = vld [vmem:[%s554 + $0x10] sm:$0xf]
      %v560 = vld [vmem:[%s554 + $0x14] sm:$0xf]
      %v561 = vld [vmem:[%s554 + $0x18] sm:$0xf]
      %v562 = vld [vmem:[%s554 + $0x1c] sm:$0xf]
      %v571 = vunpack.c.l.b16 %v555
      %v572 = vunpack.c.l.b16 %v556
      %v573 = vunpack.c.l.b16 %v557
      %v574 = vunpack.c.l.b16 %v558
      %v575 = vunpack.c.l.b16 %v559
      %v576 = vunpack.c.l.b16 %v560
      %v577 = vunpack.c.l.b16 %v561
      %v578 = vunpack.c.l.b16 %v562
      %v579 = vpack.c.b16 %v572, %v571
      %v580 = vpack.c.b16 %v574, %v573
      %v581 = vpack.c.b16 %v576, %v575
      %v582 = vpack.c.b16 %v578, %v577
      %v588 = vsel %vm475, %v436, 0
      %590 = vmatpush.bf16.msra.mxu0 0
      %591 = vmatpush.bf16.msra.mxu0 0
      %592 = vmatpush.bf16.msra.mxu0 0
      %593 = vmatpush.bf16.msra.mxu0 0
      %594 = vmatpush.bf16.msra.mxu0 %v582
      %595 = vmatpush.bf16.msra.mxu0 %v581
      %596 = vmatpush.bf16.msra.mxu0 %v580
      %597 = vmatpush.bf16.msra.mxu0 %v579
      %598 = vmatmul.bf16.gmra.mxu0 %v588
      %v599 = vpop.f32.mrf.mxu0
      %v600 = vadd.f32 0.0, %v599
      %v601 = vpop.f32.mrf.mxu0
      %602 = vdwg.mxu0
      %v603 = vadd.f32 %v553, %v600
      %604 = vst [vmem:[%s418 + $0xf] sm:$0x1] %v603
      %v605 = vld [vmem:[%s418 + $0x1] sm:$0xff]
      %v606 = vld [vmem:[%s418 + $0x9] sm:$0x7f]
      %v607 = vld [vmem:[%s3] sm:$0xf]
      %v608 = vld [vmem:[%s3 + $0x4] sm:$0xf]
      %v609 = vld [vmem:[%s3 + $0x8] sm:$0xf]
      %v610 = vld [vmem:[%s3 + $0xc] sm:$0xf]
      %v611 = vld [vmem:[%s3 + $0x10] sm:$0xf]
      %v612 = vld [vmem:[%s3 + $0x14] sm:$0xf]
      %v613 = vld [vmem:[%s3 + $0x18] sm:$0xf]
      %v614 = vld [vmem:[%s3 + $0x1c] sm:$0xf]
      %v623 = vunpack.c.l.b16 %v607
      %v624 = vunpack.c.l.b16 %v608
      %v625 = vunpack.c.l.b16 %v609
      %v626 = vunpack.c.l.b16 %v610
      %v627 = vunpack.c.l.b16 %v611
      %v628 = vunpack.c.l.b16 %v612
      %v629 = vunpack.c.l.b16 %v613
      %v630 = vunpack.c.l.b16 %v614
      %v631 = vpack.c.b16 %v624, %v623
      %v632 = vpack.c.b16 %v626, %v625
      %v633 = vpack.c.b16 %v628, %v627
      %v634 = vpack.c.b16 %v630, %v629
      %639 = vmatpush.bf16.msra.mxu0 0
      %640 = vmatpush.bf16.msra.mxu0 0
      %641 = vmatpush.bf16.msra.mxu0 0
      %642 = vmatpush.bf16.msra.mxu0 0
      %643 = vmatpush.bf16.msra.mxu0 %v634
      %644 = vmatpush.bf16.msra.mxu0 %v633
      %645 = vmatpush.bf16.msra.mxu0 %v632
      %646 = vmatpush.bf16.msra.mxu0 %v631
      %647 = vmatmul.bf16.gmra.mxu0 %v477
      %v648 = vpop.f32.mrf.mxu0
      %v649 = vadd.f32 0.0, %v648
      %v650 = vpop.f32.mrf.mxu0
      %v651 = vadd.f32 0.0, %v650
      %652 = vdwg.mxu0
      %v653 = vadd.f32 %v605, %v649
      %v654 = vadd.f32 %v606, %v651
      %655 = vst [vmem:[%s418 + $0x1] sm:$0xff] %v653
      %656 = vst [vmem:[%s418 + $0x9] sm:$0x7f] %v654
      %v657 = vld [vmem:[%s418] sm:$0xff]
      %v658 = vld [vmem:[%s418 + $0x8] sm:$0x7f]
      %v659 = vld [vmem:[%s554] sm:$0xf]
      %v660 = vld [vmem:[%s554 + $0x4] sm:$0xf]
      %v661 = vld [vmem:[%s554 + $0x8] sm:$0xf]
      %v662 = vld [vmem:[%s554 + $0xc] sm:$0xf]
      %v663 = vld [vmem:[%s554 + $0x10] sm:$0xf]
      %v664 = vld [vmem:[%s554 + $0x14] sm:$0xf]
      %v665 = vld [vmem:[%s554 + $0x18] sm:$0xf]
      %v666 = vld [vmem:[%s554 + $0x1c] sm:$0xf]
      %v667 = vshrl.u32 %v450, 16
      %v669 = vshll.u32 %v450, 16
      %v671 = vrot.slane %v669, 1
      %v672 = vor.u32 %v667, %v671
      %v681 = vunpack.c.l.b16 %v659
      %v682 = vunpack.c.l.b16 %v660
      %v683 = vunpack.c.l.b16 %v661
      %v684 = vunpack.c.l.b16 %v662
      %v685 = vunpack.c.l.b16 %v663
      %v686 = vunpack.c.l.b16 %v664
      %v687 = vunpack.c.l.b16 %v665
      %v688 = vunpack.c.l.b16 %v666
      %v689 = vpack.c.b16 %v682, %v681
      %v690 = vpack.c.b16 %v684, %v683
      %v691 = vpack.c.b16 %v686, %v685
      %v692 = vpack.c.b16 %v688, %v687
      %v698 = vsel %vm475, %v672, 0
      %700 = vmatpush.bf16.msra.mxu0 0
      %701 = vmatpush.bf16.msra.mxu0 0
      %702 = vmatpush.bf16.msra.mxu0 0
      %703 = vmatpush.bf16.msra.mxu0 0
      %704 = vmatpush.bf16.msra.mxu0 %v692
      %705 = vmatpush.bf16.msra.mxu0 %v691
      %706 = vmatpush.bf16.msra.mxu0 %v690
      %707 = vmatpush.bf16.msra.mxu0 %v689
      %708 = vmatmul.bf16.gmra.mxu0 %v698
      %v709 = vpop.f32.mrf.mxu0
      %v710 = vadd.f32 0.0, %v709
      %v711 = vpop.f32.mrf.mxu0
      %v712 = vadd.f32 0.0, %v711
      %713 = vdwg.mxu0
      %v714 = vadd.f32 %v657, %v710
      %v715 = vadd.f32 %v658, %v712
      %716 = vst [vmem:[%s418] sm:$0xff] %v714
      %717 = vst [vmem:[%s418 + $0x8] sm:$0x7f] %v715
      // Predicated region
      $region37: #{double_conv_forward.4} parent=35 // pred_check
        %p718 = pneg %p431
      $region38: #{double_conv_forward.4} parent=35 // pred_check_branch
        %720 = sbr.rel (%p718) target = $region40
      $region39: #{double_conv_forward.4} parent=35 // pred_region
        %721 = vst [vmem:[%s422] sm:$0x1] 0.0
        %722 = vst [vmem:[%s425] sm:$0x1] 0.0
      $region40: #{double_conv_forward.4} parent=35 // pred_fallthru
        _
      %v723 = vld [vmem:[%s418] sm:$0xff]
      %v724 = vld [vmem:[%s418 + $0x8] sm:$0xff]
      %v725 = vld [vmem:[%s422] sm:$0x1]
      %v726 = vadd.f32 %v723, %v724
      %v727 = vrot.slane %v726, 4
      %v728 = vadd.f32 %v726, %v727
      %v729 = vrot.slane %v728, 2
      %v730 = vadd.f32 %v728, %v729
      %v731 = vrot.slane %v730, 1
      %v732 = vadd.f32 %v730, %v731
      %v733 = vadd.f32 %v725, %v732
      %734 = vst [vmem:[%s422] sm:$0x1] %v733
      %v735 = vld [vmem:[%s425] sm:$0x1]
      %v736 = vmul.f32 %v723, %v723
      %v737 = vmul.f32 %v724, %v724
      %v738 = vadd.f32 %v736, %v737
      %v739 = vrot.slane %v738, 4
      %v740 = vadd.f32 %v738, %v739
      %v741 = vrot.slane %v740, 2
      %v742 = vadd.f32 %v740, %v741
      %v743 = vrot.slane %v742, 1
      %v744 = vadd.f32 %v742, %v743
      %v745 = vadd.f32 %v735, %v744
      %746 = vst [vmem:[%s425] sm:$0x1] %v745
      %s747 = smul.u32 2, %s23
      %p748 = scmp.lt.s32.totalorder %s22, 1
      %s749 = scalar_select %p748, %s22, 1
      %p750 = scmp.lt.s32.totalorder %s747, 1
      %s751 = scalar_select %p750, %s747, 1
      %s752 = smul.addr %s749, 2
      %s753 = sadd.s32 %s751, %s752
      %s754 = smul.addr %s753, 8
      %s755 = scalar_lea.vmem %s4, %s754
      %p756 = scmp.lt.s32.totalorder %s22, 1
      %s757 = scalar_select %p756, %s22, 1
      %s758 = scalar_lea.vmem %s5, %s757
      %p759 = scmp.lt.s32.totalorder %s22, 1
      %s760 = scalar_select %p759, %s22, 1
      %s761 = scalar_lea.vmem %s6, %s760
      // Predicated region
      $region41: #{double_conv_forward.4} parent=35 // pred_check
        %p762 = pneg %p171
      $region42: #{double_conv_forward.4} parent=35 // pred_check_branch
        %764 = sbr.rel (%p762) target = $region44
      $region43: #{double_conv_forward.4} parent=35 // pred_region
        %s765 = smul.u32 2, %s23
      $region44: #{double_conv_forward.4} parent=35 // pred_fallthru
        _
      // Predicated region
      $region45: #{double_conv_forward.4} parent=35 // pred_check
        %p766 = pneg %p197
      $region46: #{double_conv_forward.4} parent=35 // pred_check_branch
        %768 = sbr.rel (%p766) target = $region48
      $region47: #{double_conv_forward.4} parent=35 // pred_region
        _
      $region48: #{double_conv_forward.4} parent=35 // pred_fallthru
        _
      // Predicated region
      $region49: #{double_conv_forward.4} parent=35 // pred_check
        %p769 = pneg %p223
      $region50: #{double_conv_forward.4} parent=35 // pred_check_branch
        %771 = sbr.rel (%p769) target = $region52
      $region51: #{double_conv_forward.4} parent=35 // pred_region
        _
      $region52: #{double_conv_forward.4} parent=35 // pred_fallthru
        _
    $region36: #{double_conv_forward.4} parent=5 // pred_fallthru
      _
    %p772 = scmp.le.s32.totalorder 2, %s13
    // Predicated region
    $region53: #{double_conv_forward.4} parent=5 // pred_check
      %p773 = pneg %p772
    $region54: #{double_conv_forward.4} parent=5 // pred_check_branch
      %775 = sbr.rel (%p773) target = $region56
    $region55: #{double_conv_forward.4} parent=5 // pred_region
      %s776 = ssub.s32 %s13, 2
      // Predicated region
      $region57: #{double_conv_forward.4} parent=55 // pred_check
        %p777 = pneg %p177
      $region58: #{double_conv_forward.4} parent=55 // pred_check_branch
        %779 = sbr.rel (%p777) target = $region60
      $region59: #{double_conv_forward.4} parent=55 // pred_region
        %s780 = smul.u32 2, %s25
        %p781 = scmp.lt.s32.totalorder %s24, 1
        %s782 = scalar_select %p781, %s24, 1
        %p783 = scmp.lt.s32.totalorder %s780, 1
        %s784 = scalar_select %p783, %s780, 1
        %s785 = smul.addr %s782, 2
        %s786 = sadd.s32 %s784, %s785
        %s787 = smul.addr %s786, 8
        %s788 = scalar_lea.vmem %s4, %s787
      $region60: #{double_conv_forward.4} parent=55 // pred_fallthru
        _
      // Predicated region
      $region61: #{double_conv_forward.4} parent=55 // pred_check
        %p789 = pneg %p203
      $region62: #{double_conv_forward.4} parent=55 // pred_check_branch
        %791 = sbr.rel (%p789) target = $region64
      $region63: #{double_conv_forward.4} parent=55 // pred_region
        %p792 = scmp.lt.s32.totalorder %s24, 1
        %s793 = scalar_select %p792, %s24, 1
        %s794 = scalar_lea.vmem %s5, %s793
      $region64: #{double_conv_forward.4} parent=55 // pred_fallthru
        _
      // Predicated region
      $region65: #{double_conv_forward.4} parent=55 // pred_check
        %p795 = pneg %p229
      $region66: #{double_conv_forward.4} parent=55 // pred_check_branch
        %797 = sbr.rel (%p795) target = $region68
      $region67: #{double_conv_forward.4} parent=55 // pred_region
        %p798 = scmp.lt.s32.totalorder %s24, 1
        %s799 = scalar_select %p798, %s24, 1
        %s800 = scalar_lea.vmem %s6, %s799
      $region68: #{double_conv_forward.4} parent=55 // pred_fallthru
        _
    $region56: #{double_conv_forward.4} parent=5 // pred_fallthru
      _
  $region6: #{double_conv_forward.4} parent=0 // loop_footer
    %s17 = sadd.s32 1, %s13
  $region7: #{double_conv_forward.4} parent=0 // loop_footer_branch
    %12 = sbr.rel target = $region3
  $region8: #{double_conv_forward.4} parent=0 // loop_exit
    _

// kernel: tile.28
$region0: #{tile.28}
  #allocation0 [shape = 's32[1]{0}', space=sflag, size = 0x4, scoped, tag = 'scoped memory for tile.28']
  %s0 = inlined_call_operand.vmem [shape: f32[8], index: 0, kind: input, shape index: {}]
  %s1 = inlined_call_operand.vmem [shape: f32[16,8], index: 1, kind: output, shape index: {}]
  // Predicated region
  $region2: #{tile.28} parent=0 // pred_check
    _
  $region3: #{tile.28} parent=0 // pred_check_branch
    %3 = sbr.rel (0) target = $region5
  $region4: #{tile.28} parent=0 // pred_region
    _
  $region5: #{tile.28} parent=0 // pred_fallthru
    _
  %v4 = vld [vmem:[%s0] ss:$0 sm:$0xff]
  %5 = vst [vmem:[%s1] sm:$0xff] %v4
  %s6 = scalar_lea.vmem %s1, 8
  %7 = vst [vmem:[%s6] sm:$0xff] %v4

// kernel: tile.29
$region0: #{tile.29}
  %s0 = inlined_call_operand.vmem [shape: f32[16,8], index: 0, kind: input, shape index: {}]
  %s1 = inlined_call_operand.vmem [shape: f32[1,1,128], index: 1, kind: output, shape index: {}]
  $region1: #{tile.29} parent=0
    #allocation0 [shape = 'u8[4096]{0}', space=vmem, size = 0x1000, scoped, tag = 'scoped mem for output reshape']
    %v2 = vld [vmem:[%s0] sm:$0x1]
    %vm3 = vcmask 64512
    %4 = vst.msk [vmem:[#allocation0] sm:$0x1] %vm3, %v2
    %s5 = scalar_lea.vmem %s0, 15
    %v6 = vld [vmem:[%s5] sm:$0x1]
    %7 = vrot.lane.b32.xlu0 %v6, 120
    %v8 = vpop.permute.xlu0 %7
    %vm9 = vcmask 1048512
    %10 = vst.msk [vmem:[#allocation0] sm:$0x1] %vm9, %v8
    %s11 = scalar_lea.vmem %s0, 14
    %v12 = vld [vmem:[%s11] sm:$0x1]
    %13 = vrot.lane.b32.xlu0 %v12, 112
    %v14 = vpop.permute.xlu0 %13
    %vm15 = vcmask 982912
    %16 = vst.msk [vmem:[#allocation0] sm:$0x1] %vm15, %v14
    %s17 = scalar_lea.vmem %s0, 13
    %v18 = vld [vmem:[%s17] sm:$0x1]
    %19 = vrot.lane.b32.xlu0 %v18, 104
    %v20 = vpop.permute.xlu0 %19
    %vm21 = vcmask 917312
    %22 = vst.msk [vmem:[#allocation0] sm:$0x1] %vm21, %v20
    %s23 = scalar_lea.vmem %s0, 12
    %v24 = vld [vmem:[%s23] sm:$0x1]
    %25 = vrot.lane.b32.xlu0 %v24, 96
    %v26 = vpop.permute.xlu0 %25
    %vm27 = vcmask 851712
    %28 = vst.msk [vmem:[#allocation0] sm:$0x1] %vm27, %v26
    %s29 = scalar_lea.vmem %s0, 11
    %v30 = vld [vmem:[%s29] sm:$0x1]
    %31 = vrot.lane.b32.xlu0 %v30, 88
    %v32 = vpop.permute.xlu0 %31
    %vm33 = vcmask 786112
    %34 = vst.msk [vmem:[#allocation0] sm:$0x1] %vm33, %v32
    %s35 = scalar_lea.vmem %s0, 10
    %v36 = vld [vmem:[%s35] sm:$0x1]
    %37 = vrot.lane.b32.xlu0 %v36, 80
    %v38 = vpop.permute.xlu0 %37
    %vm39 = vcmask 720512
    %40 = vst.msk [vmem:[#allocation0] sm:$0x1] %vm39, %v38
    %s41 = scalar_lea.vmem %s0, 9
    %v42 = vld [vmem:[%s41] sm:$0x1]
    %43 = vrot.lane.b32.xlu0 %v42, 72
    %v44 = vpop.permute.xlu0 %43
    %vm45 = vcmask 654912
    %46 = vst.msk [vmem:[#allocation0] sm:$0x1] %vm45, %v44
    %s47 = scalar_lea.vmem %s0, 8
    %v48 = vld [vmem:[%s47] sm:$0x1]
    %49 = vrot.lane.b32.xlu0 %v48, 64
    %v50 = vpop.permute.xlu0 %49
    %vm51 = vcmask 589312
    %52 = vst.msk [vmem:[#allocation0] sm:$0x1] %vm51, %v50
    %s53 = scalar_lea.vmem %s0, 7
    %v54 = vld [vmem:[%s53] sm:$0x1]
    %55 = vrot.lane.b32.xlu0 %v54, 56
    %v56 = vpop.permute.xlu0 %55
    %vm57 = vcmask 523712
    %58 = vst.msk [vmem:[#allocation0] sm:$0x1] %vm57, %v56
    %s59 = scalar_lea.vmem %s0, 6
    %v60 = vld [vmem:[%s59] sm:$0x1]
    %61 = vrot.lane.b32.xlu0 %v60, 48
    %v62 = vpop.permute.xlu0 %61
    %vm63 = vcmask 458112
    %64 = vst.msk [vmem:[#allocation0] sm:$0x1] %vm63, %v62
    %s65 = scalar_lea.vmem %s0, 5
    %v66 = vld [vmem:[%s65] sm:$0x1]
    %67 = vrot.lane.b32.xlu0 %v66, 40
    %v68 = vpop.permute.xlu0 %67
    %vm69 = vcmask 392512
    %70 = vst.msk [vmem:[#allocation0] sm:$0x1] %vm69, %v68
    %s71 = scalar_lea.vmem %s0, 4
    %v72 = vld [vmem:[%s71] sm:$0x1]
    %73 = vrot.lane.b32.xlu0 %v72, 32
    %v74 = vpop.permute.xlu0 %73
    %vm75 = vcmask 326912
    %76 = vst.msk [vmem:[#allocation0] sm:$0x1] %vm75, %v74
    %s77 = scalar_lea.vmem %s0, 3
    %v78 = vld [vmem:[%s77] sm:$0x1]
    %79 = vrot.lane.b32.xlu0 %v78, 24
    %v80 = vpop.permute.xlu0 %79
    %vm81 = vcmask 261312
    %82 = vst.msk [vmem:[#allocation0] sm:$0x1] %vm81, %v80
    %s83 = scalar_lea.vmem %s0, 2
    %v84 = vld [vmem:[%s83] sm:$0x1]
    %85 = vrot.lane.b32.xlu0 %v84, 16
    %v86 = vpop.permute.xlu0 %85
    %vm87 = vcmask 195712
    %88 = vst.msk [vmem:[#allocation0] sm:$0x1] %vm87, %v86
    %s89 = scalar_lea.vmem %s0, 1
    %v90 = vld [vmem:[%s89] sm:$0x1]
    %91 = vrot.lane.b32.xlu0 %v90, 8
    %v92 = vpop.permute.xlu0 %91
    %vm93 = vcmask 130112
    %94 = vst.msk [vmem:[#allocation0] sm:$0x1] %vm93, %v92
    %s96 = ssub.s32 2, 1
    %v97 = vld [vmem:[#allocation0] sm:%s96]
    %s99 = ssub.s32 2, 1
    %100 = vst [vmem:[%s1] sm:%s99] %v97

// kernel: double_conv_forward.5
$region0: #{double_conv_forward.5}
  #allocation0 [shape = 'u32[]', space=smem, size = 0x4, offset = 0x4, fixed_abs, tag = 'smem constant byte address 0x4 - core index']
  #allocation1 [shape = 'u32[72,128]{1,0:T(1,128)}', space=vmem, size = 0x9000, scoped, tag = 'internal scratch']
  %s0 = inlined_call_operand.vmem [shape: f32[2,16,128], index: 0, kind: input, shape index: {}]
  %s1 = inlined_call_operand.vmem [shape: f32[1,1,128], index: 1, kind: input, shape index: {}]
  %s2 = inlined_call_operand.vmem [shape: f32[1,1,128], index: 2, kind: input, shape index: {}]
  %s3 = inlined_call_operand.vmem [shape: bf16[2,16,128], index: 3, kind: output, shape index: {}]
  %s4 = sld [smem:[#allocation0]]
  $region45: #{double_conv_forward.5} parent=0
    _
  %s6 = ssub.s32 1, %s4
  %s7 = scalar_select 0, %s6, %s4
  loop: start=0, step=1, limit=4
  $region2: #{double_conv_forward.5} parent=0 // loop_pre_header
    _
  $region3: #{double_conv_forward.5} parent=0 // loop_header
    %s9 = sphi 0, %s13
    %p10 = scmp.ge.s32.totalorder %s9, 4
    %s16 = sphi 0, %s28
    %s17 = sphi 0, %s24
    %s18 = sphi 0, %s16
    %s19 = sphi 0, %s17
    %s20 = sphi 0, %s18
    %s21 = sphi 0, %s19
    %s33 = sphi 0, %s35
    %s36 = sphi 0, %s33
    %s37 = sphi 0, %s36
    %s53 = sphi 0, %s37
    %s57 = sphi 0, %s57
    %s59 = sphi 0, %s57
    %s60 = sphi 0, %s59
    %s74 = sphi 0, %s60
    %s78 = sphi 0, %s78
    %s80 = sphi 0, %s78
    %s81 = sphi 0, %s80
    %s95 = sphi 0, %s81
    %s103 = sphi 0, %s105
    %s106 = sphi 0, %s103
    %s107 = sphi 0, %s106
    %s123 = sphi 0, %s107
  $region4: #{double_conv_forward.5} parent=0 // loop_header_branch
    %12 = sbr.rel (%p10) target = $region8
  $region5: #{double_conv_forward.5} parent=0 // loop_body
    %s14 = ssub.s32 %s9, 1
    %s15 = ssub.s32 %s9, 2
    %s22 = sadd.s32 1, %s17
    %p23 = scmp.ge.s32.totalorder %s22, 1
    %s24 = scalar_select %p23, 0, %s22
    %s25 = sadd.s32 1, %s16
    %s26 = scalar_select %p23, %s25, %s16
    %p27 = scmp.ge.s32.totalorder %s26, 2
    %s28 = scalar_select %p27, 0, %s26
    %s29 = ssub.s32 %s16, %s28
    %s30 = ssub.s32 %s17, %s24
    %s31 = sor.u32 %s29, %s30
    %p32 = scmp.eq.s32.totalorder %s31, 0
    %s34 = sadd.s32 %s33, 1
    %s35 = scalar_select %p32, %s33, %s34
    %p38 = pneg %p32
    %p39 = scmp.eq.s32.totalorder %s9, 1
    %p40 = por %p38, %p39
    %p41 = scmp.ne.s32.totalorder %s33, %s36
    %p42 = scmp.eq.s32.totalorder %s9, 0
    %p43 = por %p41, %p42
    %p44 = scmp.ne.s32.totalorder %s33, %s36
    %p45 = scmp.eq.s32.totalorder %s14, 1
    %p46 = por %p44, %p45
    %p47 = scmp.ne.s32.totalorder %s36, %s37
    %p48 = scmp.eq.s32.totalorder %s14, 0
    %p49 = por %p47, %p48
    %p50 = scmp.ne.s32.totalorder %s36, %s37
    %p51 = scmp.eq.s32.totalorder %s15, 1
    %p52 = por %p50, %p51
    %p54 = scmp.ne.s32.totalorder %s37, %s53
    %p55 = scmp.eq.s32.totalorder %s15, 0
    %p56 = por %p54, %p55
    %s58 = sadd.s32 %s57, 1
    %p61 = scmp.eq.s32.totalorder %s9, 1
    %p62 = scmp.ne.s32.totalorder %s57, %s59
    %p63 = scmp.eq.s32.totalorder %s9, 0
    %p64 = por %p62, %p63
    %p65 = scmp.ne.s32.totalorder %s57, %s59
    %p66 = scmp.eq.s32.totalorder %s14, 1
    %p67 = por %p65, %p66
    %p68 = scmp.ne.s32.totalorder %s59, %s60
    %p69 = scmp.eq.s32.totalorder %s14, 0
    %p70 = por %p68, %p69
    %p71 = scmp.ne.s32.totalorder %s59, %s60
    %p72 = scmp.eq.s32.totalorder %s15, 1
    %p73 = por %p71, %p72
    %p75 = scmp.ne.s32.totalorder %s60, %s74
    %p76 = scmp.eq.s32.totalorder %s15, 0
    %p77 = por %p75, %p76
    %s79 = sadd.s32 %s78, 1
    %p82 = scmp.eq.s32.totalorder %s9, 1
    %p83 = scmp.ne.s32.totalorder %s78, %s80
    %p84 = scmp.eq.s32.totalorder %s9, 0
    %p85 = por %p83, %p84
    %p86 = scmp.ne.s32.totalorder %s78, %s80
    %p87 = scmp.eq.s32.totalorder %s14, 1
    %p88 = por %p86, %p87
    %p89 = scmp.ne.s32.totalorder %s80, %s81
    %p90 = scmp.eq.s32.totalorder %s14, 0
    %p91 = por %p89, %p90
    %p92 = scmp.ne.s32.totalorder %s80, %s81
    %p93 = scmp.eq.s32.totalorder %s15, 1
    %p94 = por %p92, %p93
    %p96 = scmp.ne.s32.totalorder %s81, %s95
    %p97 = scmp.eq.s32.totalorder %s15, 0
    %p98 = por %p96, %p97
    %s99 = ssub.s32 %s16, %s28
    %s100 = ssub.s32 %s17, %s24
    %s101 = sor.u32 %s99, %s100
    %p102 = scmp.eq.s32.totalorder %s101, 0
    %s104 = sadd.s32 %s103, 1
    %s105 = scalar_select %p102, %s103, %s104
    %p108 = pneg %p102
    %p109 = scmp.eq.s32.totalorder %s9, 1
    %p110 = por %p108, %p109
    %p111 = scmp.ne.s32.totalorder %s103, %s106
    %p112 = scmp.eq.s32.totalorder %s9, 0
    %p113 = por %p111, %p112
    %p114 = scmp.ne.s32.totalorder %s103, %s106
    %p115 = scmp.eq.s32.totalorder %s14, 1
    %p116 = por %p114, %p115
    %p117 = scmp.ne.s32.totalorder %s106, %s107
    %p118 = scmp.eq.s32.totalorder %s14, 0
    %p119 = por %p117, %p118
    %p120 = scmp.ne.s32.totalorder %s106, %s107
    %p121 = scmp.eq.s32.totalorder %s15, 1
    %p122 = por %p120, %p121
    %p124 = scmp.ne.s32.totalorder %s107, %s123
    %p125 = scmp.eq.s32.totalorder %s15, 0
    %p126 = por %p124, %p125
    %p127 = scmp.le.s32.totalorder 1, %s9
    %p128 = scmp.lt.s32.totalorder %s9, 3
    %p129 = pnand %p127, %p128
    %p130 = pneg %p129
    // Predicated region
    $region9: #{double_conv_forward.5} parent=5 // pred_check
      _
    $region10: #{double_conv_forward.5} parent=5 // pred_check_branch
      %132 = sbr.rel (%p129) target = $region12
    $region11: #{double_conv_forward.5} parent=5 // pred_region
      %s133 = ssub.s32 %s9, 1
      // Predicated region
      $region13: #{double_conv_forward.5} parent=11 // pred_check
        %p134 = pneg %p70
      $region14: #{double_conv_forward.5} parent=11 // pred_check_branch
        %136 = sbr.rel (%p134) target = $region16
      $region15: #{double_conv_forward.5} parent=11 // pred_region
        _
      $region16: #{double_conv_forward.5} parent=11 // pred_fallthru
        _
      // Predicated region
      $region17: #{double_conv_forward.5} parent=11 // pred_check
        %p137 = pneg %p91
      $region18: #{double_conv_forward.5} parent=11 // pred_check_branch
        %139 = sbr.rel (%p137) target = $region20
      $region19: #{double_conv_forward.5} parent=11 // pred_region
        _
      $region20: #{double_conv_forward.5} parent=11 // pred_fallthru
        _
    $region12: #{double_conv_forward.5} parent=5 // pred_fallthru
      _
    %p140 = scmp.lt.s32.totalorder %s9, 2
    // Predicated region
    $region21: #{double_conv_forward.5} parent=5 // pred_check
      %p141 = pneg %p140
    $region22: #{double_conv_forward.5} parent=5 // pred_check_branch
      %143 = sbr.rel (%p141) target = $region24
    $region23: #{double_conv_forward.5} parent=5 // pred_region
      // Predicated region
      $region25: #{double_conv_forward.5} parent=23 // pred_check
        %p144 = pneg %p43
      $region26: #{double_conv_forward.5} parent=23 // pred_check_branch
        %146 = sbr.rel (%p144) target = $region28
      $region27: #{double_conv_forward.5} parent=23 // pred_region
        %s147 = smul.u32 2, %s17
        %p148 = scmp.lt.s32.totalorder %s16, 1
        %s149 = scalar_select %p148, %s16, 1
        %p150 = scmp.lt.s32.totalorder %s147, 1
        %s151 = scalar_select %p150, %s147, 1
        %s152 = smul.addr %s149, 2
        %s153 = sadd.s32 %s151, %s152
        %s154 = smul.addr %s153, 8
        %s155 = scalar_lea.vmem %s0, %s154
        %s156 = smul.u32 2, %s17
      $region28: #{double_conv_forward.5} parent=23 // pred_fallthru
        _
    $region24: #{double_conv_forward.5} parent=5 // pred_fallthru
      _
    %p157 = scmp.le.s32.totalorder 1, %s9
    %p158 = scmp.lt.s32.totalorder %s9, 3
    %p159 = pnand %p157, %p158
    %p160 = pneg %p159
    // Predicated region
    $region29: #{double_conv_forward.5} parent=5 // pred_check
      _
    $region30: #{double_conv_forward.5} parent=5 // pred_check_branch
      %162 = sbr.rel (%p159) target = $region32
    $region31: #{double_conv_forward.5} parent=5 // pred_region
      %s163 = ssub.s32 %s9, 1
      %s164 = smul.u32 2, %s19
      %p165 = scmp.lt.s32.totalorder %s18, 1
      %s166 = scalar_select %p165, %s18, 1
      %p167 = scmp.lt.s32.totalorder %s164, 1
      %s168 = scalar_select %p167, %s164, 1
      %s169 = smul.addr %s166, 2
      %s170 = sadd.s32 %s168, %s169
      %s171 = smul.addr %s170, 8
      %s172 = scalar_lea.vmem %s0, %s171
      %p173 = pneg %p49
      %p174 = pneg %p46
      %p175 = pneg %p70
      %p176 = pneg %p67
      %p177 = pneg %p91
      %p178 = pneg %p88
      %p179 = pneg %p119
      %p180 = pneg %p116
      %s181 = smul.u32 2, %s19
      %p182 = scmp.lt.s32.totalorder %s18, 1
      %s183 = scalar_select %p182, %s18, 1
      %p184 = scmp.lt.s32.totalorder %s181, 1
      %s185 = scalar_select %p184, %s181, 1
      %s186 = smul.addr %s183, 2
      %s187 = sadd.s32 %s185, %s186
      %s188 = smul.addr %s187, 4
      %s189 = scalar_lea.vmem %s3, %s188
      %s190 = smul.u32 2, %s19
      %p191 = scmp.lt.s32.totalorder %s18, 1
      %s192 = scalar_select %p191, %s18, 1
      %p193 = scmp.lt.s32.totalorder %s190, 1
      %s194 = scalar_select %p193, %s190, 1
      %s195 = smul.addr %s192, 2
      %s196 = sadd.s32 %s194, %s195
      %s197 = smul.addr %s196, 8
      %s198 = scalar_lea.vmem %s0, %s197
      %s199 = smul.u32 2, %s19
      %s200 = smul.u32 2, %s19
      %p201 = scmp.lt.s32.totalorder %s18, 1
      %s202 = scalar_select %p201, %s18, 1
      %p203 = scmp.lt.s32.totalorder %s200, 1
      %s204 = scalar_select %p203, %s200, 1
      %s205 = smul.addr %s202, 2
      %s206 = sadd.s32 %s204, %s205
      %s207 = smul.addr %s206, 4
      %s208 = scalar_lea.vmem %s3, %s207
      %s209 = smul.u32 2, %s19
      %v210 = vld [vmem:[%s198] sm:$0xff]
      %v211 = vld [vmem:[%s198 + $0x8] sm:$0xff]
      %v212 = vld [vmem:[%s1] sm:$0x1]
      %v214 = vperm.slane %v212, 0
      %v216 = vmul.f32 %v210, %v214
      %v217 = vmul.f32 %v211, %v214
      %v218 = vld [vmem:[%s2] sm:$0x1]
      %v220 = vperm.slane %v218, 0
      %v222 = vadd.f32 %v216, %v220
      %v223 = vadd.f32 %v217, %v220
      %v224 = vmax.f32 %v222, 0.0
      %v225 = vmax.f32 %v223, 0.0
      %v226 = vpack.c.bf16 %v224, %v224
      %v227 = vpack.c.bf16 %v225, %v225
      %228 = vst [vmem:[%s208] sm:$0xf] %v226
      %229 = vst [vmem:[%s208 + $0x4] sm:$0xf] %v227
      %s230 = smul.u32 2, %s19
      %p231 = scmp.lt.s32.totalorder %s18, 1
      %s232 = scalar_select %p231, %s18, 1
      %p233 = scmp.lt.s32.totalorder %s230, 1
      %s234 = scalar_select %p233, %s230, 1
      %s235 = smul.addr %s232, 2
      %s236 = sadd.s32 %s234, %s235
      %s237 = smul.addr %s236, 4
      %s238 = scalar_lea.vmem %s3, %s237
      // Predicated region
      $region33: #{double_conv_forward.5} parent=31 // pred_check
        %p239 = pneg %p116
      $region34: #{double_conv_forward.5} parent=31 // pred_check_branch
        %241 = sbr.rel (%p239) target = $region36
      $region35: #{double_conv_forward.5} parent=31 // pred_region
        %s242 = smul.u32 2, %s19
      $region36: #{double_conv_forward.5} parent=31 // pred_fallthru
        _
    $region32: #{double_conv_forward.5} parent=5 // pred_fallthru
      _
    %p243 = scmp.le.s32.totalorder 2, %s9
    // Predicated region
    $region37: #{double_conv_forward.5} parent=5 // pred_check
      %p244 = pneg %p243
    $region38: #{double_conv_forward.5} parent=5 // pred_check_branch
      %246 = sbr.rel (%p244) target = $region40
    $region39: #{double_conv_forward.5} parent=5 // pred_region
      %s247 = ssub.s32 %s9, 2
      // Predicated region
      $region41: #{double_conv_forward.5} parent=39 // pred_check
        %p248 = pneg %p122
      $region42: #{double_conv_forward.5} parent=39 // pred_check_branch
        %250 = sbr.rel (%p248) target = $region44
      $region43: #{double_conv_forward.5} parent=39 // pred_region
        %s251 = smul.u32 2, %s21
        %p252 = scmp.lt.s32.totalorder %s20, 1
        %s253 = scalar_select %p252, %s20, 1
        %p254 = scmp.lt.s32.totalorder %s251, 1
        %s255 = scalar_select %p254, %s251, 1
        %s256 = smul.addr %s253, 2
        %s257 = sadd.s32 %s255, %s256
        %s258 = smul.addr %s257, 4
        %s259 = scalar_lea.vmem %s3, %s258
      $region44: #{double_conv_forward.5} parent=39 // pred_fallthru
        _
    $region40: #{double_conv_forward.5} parent=5 // pred_fallthru
      _
  $region6: #{double_conv_forward.5} parent=0 // loop_footer
    %s13 = sadd.s32 1, %s9
  $region7: #{double_conv_forward.5} parent=0 // loop_footer_branch
    %8 = sbr.rel target = $region3
  $region8: #{double_conv_forward.5} parent=0 // loop_exit
    _

// kernel: double_conv_forward.6
$region0: #{double_conv_forward.6}
  #allocation0 [shape = 'u32[]', space=smem, size = 0x4, offset = 0x4, fixed_abs, tag = 'smem constant byte address 0x4 - core index']
  #allocation1 [shape = 'u32[72,128]{1,0:T(1,128)}', space=vmem, size = 0x9000, scoped, tag = 'internal scratch']
  %s0 = inlined_call_operand.vmem [shape: bf16[2,16,128], index: 0, kind: input, shape index: {}, may-alias: {0,1,2}]
  %s1 = inlined_call_operand.vmem [shape: bf16[2,16,128], index: 1, kind: input, shape index: {}, may-alias: {0,1,2}]
  %s2 = inlined_call_operand.vmem [shape: bf16[2,16,128], index: 2, kind: input, shape index: {}, may-alias: {0,1,2}]
  %s3 = inlined_call_operand.vmem [shape: bf16[3,128,128], index: 3, kind: input, shape index: {}]
  %s4 = inlined_call_operand.vmem [shape: f32[2,16,128], index: 4, kind: output, shape index: {0}]
  %s5 = inlined_call_operand.vmem [shape: f32[2,1,128], index: 5, kind: output, shape index: {1}]
  %s6 = inlined_call_operand.vmem [shape: f32[2,1,128], index: 6, kind: output, shape index: {2}]
  %7 = xla_tuple %s4, %s5, %s6
  %s8 = sld [smem:[#allocation0]]
  $region69: #{double_conv_forward.6} parent=0
    _
  %s10 = ssub.s32 1, %s8
  %s11 = scalar_select 0, %s10, %s8
  loop: start=0, step=1, limit=4
  $region2: #{double_conv_forward.6} parent=0 // loop_pre_header
    _
  $region3: #{double_conv_forward.6} parent=0 // loop_header
    %s13 = sphi 0, %s17
    %p14 = scmp.ge.s32.totalorder %s13, 4
    %s20 = sphi 0, %s32
    %s21 = sphi 0, %s28
    %s22 = sphi 0, %s20
    %s23 = sphi 0, %s21
    %s24 = sphi 0, %s22
    %s25 = sphi 0, %s23
    %s45 = sphi 0, %s47
    %s48 = sphi 0, %s45
    %s49 = sphi 0, %s48
    %s65 = sphi 0, %s49
    %s73 = sphi 0, %s75
    %s76 = sphi 0, %s73
    %s77 = sphi 0, %s76
    %s93 = sphi 0, %s77
    %s109 = sphi 0, %s111
    %s112 = sphi 0, %s109
    %s113 = sphi 0, %s112
    %s129 = sphi 0, %s113
    %s133 = sphi 0, %s133
    %s135 = sphi 0, %s133
    %s136 = sphi 0, %s135
    %s150 = sphi 0, %s136
    %s158 = sphi 0, %s160
    %s161 = sphi 0, %s158
    %s162 = sphi 0, %s161
    %s178 = sphi 0, %s162
    %s184 = sphi 0, %s186
    %s187 = sphi 0, %s184
    %s188 = sphi 0, %s187
    %s204 = sphi 0, %s188
    %s210 = sphi 0, %s212
    %s213 = sphi 0, %s210
    %s214 = sphi 0, %s213
    %s230 = sphi 0, %s214
  $region4: #{double_conv_forward.6} parent=0 // loop_header_branch
    %16 = sbr.rel (%p14) target = $region8
  $region5: #{double_conv_forward.6} parent=0 // loop_body
    %s18 = ssub.s32 %s13, 1
    %s19 = ssub.s32 %s13, 2
    %s26 = sadd.s32 1, %s21
    %p27 = scmp.ge.s32.totalorder %s26, 1
    %s28 = scalar_select %p27, 0, %s26
    %s29 = sadd.s32 1, %s20
    %s30 = scalar_select %p27, %s29, %s20
    %p31 = scmp.ge.s32.totalorder %s30, 2
    %s32 = scalar_select %p31, 0, %s30
    %s33 = smul.u32 %s21, 2
    %s34 = ssub.s32 %s33, 1
    %p35 = scmp.gt.s32.totalorder %s34, 0
    %s36 = scalar_select %p35, %s34, 0
    %s37 = smul.u32 %s28, 2
    %s38 = ssub.s32 %s37, 1
    %p39 = scmp.gt.s32.totalorder %s38, 0
    %s40 = scalar_select %p39, %s38, 0
    %s41 = ssub.s32 %s20, %s32
    %s42 = ssub.s32 %s36, %s40
    %s43 = sor.u32 %s41, %s42
    %p44 = scmp.eq.s32.totalorder %s43, 0
    %s46 = sadd.s32 %s45, 1
    %s47 = scalar_select %p44, %s45, %s46
    %p50 = pneg %p44
    %p51 = scmp.eq.s32.totalorder %s13, 1
    %p52 = por %p50, %p51
    %p53 = scmp.ne.s32.totalorder %s45, %s48
    %p54 = scmp.eq.s32.totalorder %s13, 0
    %p55 = por %p53, %p54
    %p56 = scmp.ne.s32.totalorder %s45, %s48
    %p57 = scmp.eq.s32.totalorder %s18, 1
    %p58 = por %p56, %p57
    %p59 = scmp.ne.s32.totalorder %s48, %s49
    %p60 = scmp.eq.s32.totalorder %s18, 0
    %p61 = por %p59, %p60
    %p62 = scmp.ne.s32.totalorder %s48, %s49
    %p63 = scmp.eq.s32.totalorder %s19, 1
    %p64 = por %p62, %p63
    %p66 = scmp.ne.s32.totalorder %s49, %s65
    %p67 = scmp.eq.s32.totalorder %s19, 0
    %p68 = por %p66, %p67
    %s69 = ssub.s32 %s20, %s32
    %s70 = ssub.s32 %s21, %s28
    %s71 = sor.u32 %s69, %s70
    %p72 = scmp.eq.s32.totalorder %s71, 0
    %s74 = sadd.s32 %s73, 1
    %s75 = scalar_select %p72, %s73, %s74
    %p78 = pneg %p72
    %p79 = scmp.eq.s32.totalorder %s13, 1
    %p80 = por %p78, %p79
    %p81 = scmp.ne.s32.totalorder %s73, %s76
    %p82 = scmp.eq.s32.totalorder %s13, 0
    %p83 = por %p81, %p82
    %p84 = scmp.ne.s32.totalorder %s73, %s76
    %p85 = scmp.eq.s32.totalorder %s18, 1
    %p86 = por %p84, %p85
    %p87 = scmp.ne.s32.totalorder %s76, %s77
    %p88 = scmp.eq.s32.totalorder %s18, 0
    %p89 = por %p87, %p88
    %p90 = scmp.ne.s32.totalorder %s76, %s77
    %p91 = scmp.eq.s32.totalorder %s19, 1
    %p92 = por %p90, %p91
    %p94 = scmp.ne.s32.totalorder %s77, %s93
    %p95 = scmp.eq.s32.totalorder %s19, 0
    %p96 = por %p94, %p95
    %s97 = sadd.s32 %s21, 1
    %s98 = smul.u32 %s97, 2
    %p99 = scmp.lt.s32.totalorder %s98, 1
    %s100 = scalar_select %p99, %s98, 1
    %s101 = sadd.s32 %s28, 1
    %s102 = smul.u32 %s101, 2
    %p103 = scmp.lt.s32.totalorder %s102, 1
    %s104 = scalar_select %p103, %s102, 1
    %s105 = ssub.s32 %s20, %s32
    %s106 = ssub.s32 %s100, %s104
    %s107 = sor.u32 %s105, %s106
    %p108 = scmp.eq.s32.totalorder %s107, 0
    %s110 = sadd.s32 %s109, 1
    %s111 = scalar_select %p108, %s109, %s110
    %p114 = pneg %p108
    %p115 = scmp.eq.s32.totalorder %s13, 1
    %p116 = por %p114, %p115
    %p117 = scmp.ne.s32.totalorder %s109, %s112
    %p118 = scmp.eq.s32.totalorder %s13, 0
    %p119 = por %p117, %p118
    %p120 = scmp.ne.s32.totalorder %s109, %s112
    %p121 = scmp.eq.s32.totalorder %s18, 1
    %p122 = por %p120, %p121
    %p123 = scmp.ne.s32.totalorder %s112, %s113
    %p124 = scmp.eq.s32.totalorder %s18, 0
    %p125 = por %p123, %p124
    %p126 = scmp.ne.s32.totalorder %s112, %s113
    %p127 = scmp.eq.s32.totalorder %s19, 1
    %p128 = por %p126, %p127
    %p130 = scmp.ne.s32.totalorder %s113, %s129
    %p131 = scmp.eq.s32.totalorder %s19, 0
    %p132 = por %p130, %p131
    %s134 = sadd.s32 %s133, 1
    %p137 = scmp.eq.s32.totalorder %s13, 1
    %p138 = scmp.ne.s32.totalorder %s133, %s135
    %p139 = scmp.eq.s32.totalorder %s13, 0
    %p140 = por %p138, %p139
    %p141 = scmp.ne.s32.totalorder %s133, %s135
    %p142 = scmp.eq.s32.totalorder %s18, 1
    %p143 = por %p141, %p142
    %p144 = scmp.ne.s32.totalorder %s135, %s136
    %p145 = scmp.eq.s32.totalorder %s18, 0
    %p146 = por %p144, %p145
    %p147 = scmp.ne.s32.totalorder %s135, %s136
    %p148 = scmp.eq.s32.totalorder %s19, 1
    %p149 = por %p147, %p148
    %p151 = scmp.ne.s32.totalorder %s136, %s150
    %p152 = scmp.eq.s32.totalorder %s19, 0
    %p153 = por %p151, %p152
    %s154 = ssub.s32 %s20, %s32
    %s155 = ssub.s32 %s21, %s28
    %s156 = sor.u32 %s154, %s155
    %p157 = scmp.eq.s32.totalorder %s156, 0
    %s159 = sadd.s32 %s158, 1
    %s160 = scalar_select %p157, %s158, %s159
    %p163 = pneg %p157
    %p164 = scmp.eq.s32.totalorder %s13, 1
    %p165 = por %p163, %p164
    %p166 = scmp.ne.s32.totalorder %s158, %s161
    %p167 = scmp.eq.s32.totalorder %s13, 0
    %p168 = por %p166, %p167
    %p169 = scmp.ne.s32.totalorder %s158, %s161
    %p170 = scmp.eq.s32.totalorder %s18, 1
    %p171 = por %p169, %p170
    %p172 = scmp.ne.s32.totalorder %s161, %s162
    %p173 = scmp.eq.s32.totalorder %s18, 0
    %p174 = por %p172, %p173
    %p175 = scmp.ne.s32.totalorder %s161, %s162
    %p176 = scmp.eq.s32.totalorder %s19, 1
    %p177 = por %p175, %p176
    %p179 = scmp.ne.s32.totalorder %s162, %s178
    %p180 = scmp.eq.s32.totalorder %s19, 0
    %p181 = por %p179, %p180
    %s182 = ssub.s32 %s20, %s32
    %p183 = scmp.eq.s32.totalorder %s182, 0
    %s185 = sadd.s32 %s184, 1
    %s186 = scalar_select %p183, %s184, %s185
    %p189 = pneg %p183
    %p190 = scmp.eq.s32.totalorder %s13, 1
    %p191 = por %p189, %p190
    %p192 = scmp.ne.s32.totalorder %s184, %s187
    %p193 = scmp.eq.s32.totalorder %s13, 0
    %p194 = por %p192, %p193
    %p195 = scmp.ne.s32.totalorder %s184, %s187
    %p196 = scmp.eq.s32.totalorder %s18, 1
    %p197 = por %p195, %p196
    %p198 = scmp.ne.s32.totalorder %s187, %s188
    %p199 = scmp.eq.s32.totalorder %s18, 0
    %p200 = por %p198, %p199
    %p201 = scmp.ne.s32.totalorder %s187, %s188
    %p202 = scmp.eq.s32.totalorder %s19, 1
    %p203 = por %p201, %p202
    %p205 = scmp.ne.s32.totalorder %s188, %s204
    %p206 = scmp.eq.s32.totalorder %s19, 0
    %p207 = por %p205, %p206
    %s208 = ssub.s32 %s20, %s32
    %p209 = scmp.eq.s32.totalorder %s208, 0
    %s211 = sadd.s32 %s210, 1
    %s212 = scalar_select %p209, %s210, %s211
    %p215 = pneg %p209
    %p216 = scmp.eq.s32.totalorder %s13, 1
    %p217 = por %p215, %p216
    %p218 = scmp.ne.s32.totalorder %s210, %s213
    %p219 = scmp.eq.s32.totalorder %s13, 0
    %p220 = por %p218, %p219
    %p221 = scmp.ne.s32.totalorder %s210, %s213
    %p222 = scmp.eq.s32.totalorder %s18, 1
    %p223 = por %p221, %p222
    %p224 = scmp.ne.s32.totalorder %s213, %s214
    %p225 = scmp.eq.s32.totalorder %s18, 0
    %p226 = por %p224, %p225
    %p227 = scmp.ne.s32.totalorder %s213, %s214
    %p228 = scmp.eq.s32.totalorder %s19, 1
    %p229 = por %p227, %p228
    %p231 = scmp.ne.s32.totalorder %s214, %s230
    %p232 = scmp.eq.s32.totalorder %s19, 0
    %p233 = por %p231, %p232
    %p234 = scmp.le.s32.totalorder 1, %s13
    %p235 = scmp.lt.s32.totalorder %s13, 3
    %p236 = pnand %p234, %p235
    %p237 = pneg %p236
    // Predicated region
    $region9: #{double_conv_forward.6} parent=5 // pred_check
      _
    $region10: #{double_conv_forward.6} parent=5 // pred_check_branch
      %239 = sbr.rel (%p236) target = $region12
    $region11: #{double_conv_forward.6} parent=5 // pred_region
      %s240 = ssub.s32 %s13, 1
      // Predicated region
      $region13: #{double_conv_forward.6} parent=11 // pred_check
        %p241 = pneg %p146
      $region14: #{double_conv_forward.6} parent=11 // pred_check_branch
        %243 = sbr.rel (%p241) target = $region16
      $region15: #{double_conv_forward.6} parent=11 // pred_region
        _
      $region16: #{double_conv_forward.6} parent=11 // pred_fallthru
        _
    $region12: #{double_conv_forward.6} parent=5 // pred_fallthru
      _
    %p244 = scmp.lt.s32.totalorder %s13, 2
    // Predicated region
    $region17: #{double_conv_forward.6} parent=5 // pred_check
      %p245 = pneg %p244
    $region18: #{double_conv_forward.6} parent=5 // pred_check_branch
      %247 = sbr.rel (%p245) target = $region20
    $region19: #{double_conv_forward.6} parent=5 // pred_region
      // Predicated region
      $region21: #{double_conv_forward.6} parent=19 // pred_check
        %p248 = pneg %p55
      $region22: #{double_conv_forward.6} parent=19 // pred_check_branch
        %250 = sbr.rel (%p248) target = $region24
      $region23: #{double_conv_forward.6} parent=19 // pred_region
        %s251 = smul.u32 %s21, 2
        %s252 = ssub.s32 %s251, 1
        %p253 = scmp.gt.s32.totalorder %s252, 0
        %s254 = scalar_select %p253, %s252, 0
        %p255 = scmp.lt.s32.totalorder %s20, 1
        %s256 = scalar_select %p255, %s20, 1
        %p257 = scmp.lt.s32.totalorder %s254, 1
        %s258 = scalar_select %p257, %s254, 1
        %s259 = smul.addr %s256, 2
        %s260 = sadd.s32 %s258, %s259
        %s261 = smul.addr %s260, 4
        %s262 = scalar_lea.vmem %s0, %s261
        %s263 = smul.u32 %s21, 2
        %s264 = ssub.s32 %s263, 1
        %p265 = scmp.gt.s32.totalorder %s264, 0
        %s266 = scalar_select %p265, %s264, 0
      $region24: #{double_conv_forward.6} parent=19 // pred_fallthru
        _
      // Predicated region
      $region25: #{double_conv_forward.6} parent=19 // pred_check
        %p267 = pneg %p83
      $region26: #{double_conv_forward.6} parent=19 // pred_check_branch
        %269 = sbr.rel (%p267) target = $region28
      $region27: #{double_conv_forward.6} parent=19 // pred_region
        %s270 = smul.u32 2, %s21
        %p271 = scmp.lt.s32.totalorder %s20, 1
        %s272 = scalar_select %p271, %s20, 1
        %p273 = scmp.lt.s32.totalorder %s270, 1
        %s274 = scalar_select %p273, %s270, 1
        %s275 = smul.addr %s272, 2
        %s276 = sadd.s32 %s274, %s275
        %s277 = smul.addr %s276, 4
        %s278 = scalar_lea.vmem %s1, %s277
        %s279 = smul.u32 2, %s21
      $region28: #{double_conv_forward.6} parent=19 // pred_fallthru
        _
      // Predicated region
      $region29: #{double_conv_forward.6} parent=19 // pred_check
        %p280 = pneg %p119
      $region30: #{double_conv_forward.6} parent=19 // pred_check_branch
        %282 = sbr.rel (%p280) target = $region32
      $region31: #{double_conv_forward.6} parent=19 // pred_region
        %s283 = sadd.s32 %s21, 1
        %s284 = smul.u32 %s283, 2
        %p285 = scmp.lt.s32.totalorder %s284, 1
        %s286 = scalar_select %p285, %s284, 1
        %p287 = scmp.lt.s32.totalorder %s20, 1
        %s288 = scalar_select %p287, %s20, 1
        %p289 = scmp.lt.s32.totalorder %s286, 1
        %s290 = scalar_select %p289, %s286, 1
        %s291 = smul.addr %s288, 2
        %s292 = sadd.s32 %s290, %s291
        %s293 = smul.addr %s292, 4
        %s294 = scalar_lea.vmem %s2, %s293
        %s295 = sadd.s32 %s21, 1
        %s296 = smul.u32 %s295, 2
        %p297 = scmp.lt.s32.totalorder %s296, 1
        %s298 = scalar_select %p297, %s296, 1
      $region32: #{double_conv_forward.6} parent=19 // pred_fallthru
        _
    $region20: #{double_conv_forward.6} parent=5 // pred_fallthru
      _
    %p299 = scmp.le.s32.totalorder 1, %s13
    %p300 = scmp.lt.s32.totalorder %s13, 3
    %p301 = pnand %p299, %p300
    %p302 = pneg %p301
    // Predicated region
    $region33: #{double_conv_forward.6} parent=5 // pred_check
      _
    $region34: #{double_conv_forward.6} parent=5 // pred_check_branch
      %304 = sbr.rel (%p301) target = $region36
    $region35: #{double_conv_forward.6} parent=5 // pred_region
      %s305 = ssub.s32 %s13, 1
      %s306 = smul.u32 %s23, 2
      %s307 = ssub.s32 %s306, 1
      %p308 = scmp.gt.s32.totalorder %s307, 0
      %s309 = scalar_select %p308, %s307, 0
      %p310 = scmp.lt.s32.totalorder %s22, 1
      %s311 = scalar_select %p310, %s22, 1
      %p312 = scmp.lt.s32.totalorder %s309, 1
      %s313 = scalar_select %p312, %s309, 1
      %s314 = smul.addr %s311, 2
      %s315 = sadd.s32 %s313, %s314
      %s316 = smul.addr %s315, 4
      %s317 = scalar_lea.vmem %s0, %s316
      %p318 = pneg %p61
      %p319 = pneg %p58
      %s320 = smul.u32 2, %s23
      %p321 = scmp.lt.s32.totalorder %s22, 1
      %s322 = scalar_select %p321, %s22, 1
      %p323 = scmp.lt.s32.totalorder %s320, 1
      %s324 = scalar_select %p323, %s320, 1
      %s325 = smul.addr %s322, 2
      %s326 = sadd.s32 %s324, %s325
      %s327 = smul.addr %s326, 4
      %s328 = scalar_lea.vmem %s1, %s327
      %p329 = pneg %p89
      %p330 = pneg %p86
      %s331 = sadd.s32 %s23, 1
      %s332 = smul.u32 %s331, 2
      %p333 = scmp.lt.s32.totalorder %s332, 1
      %s334 = scalar_select %p333, %s332, 1
      %p335 = scmp.lt.s32.totalorder %s22, 1
      %s336 = scalar_select %p335, %s22, 1
      %p337 = scmp.lt.s32.totalorder %s334, 1
      %s338 = scalar_select %p337, %s334, 1
      %s339 = smul.addr %s336, 2
      %s340 = sadd.s32 %s338, %s339
      %s341 = smul.addr %s340, 4
      %s342 = scalar_lea.vmem %s2, %s341
      %p343 = pneg %p125
      %p344 = pneg %p122
      %p345 = pneg %p146
      %p346 = pneg %p143
      %p347 = pneg %p174
      %p348 = pneg %p171
      %s349 = smul.u32 2, %s23
      %p350 = scmp.lt.s32.totalorder %s22, 1
      %s351 = scalar_select %p350, %s22, 1
      %p352 = scmp.lt.s32.totalorder %s349, 1
      %s353 = scalar_select %p352, %s349, 1
      %s354 = smul.addr %s351, 2
      %s355 = sadd.s32 %s353, %s354
      %s356 = smul.addr %s355, 8
      %s357 = scalar_lea.vmem %s4, %s356
      %p358 = pneg %p200
      %p359 = pneg %p197
      %p360 = scmp.lt.s32.totalorder %s22, 1
      %s361 = scalar_select %p360, %s22, 1
      %s362 = scalar_lea.vmem %s5, %s361
      %p363 = pneg %p226
      %p364 = pneg %p223
      %p365 = scmp.lt.s32.totalorder %s22, 1
      %s366 = scalar_select %p365, %s22, 1
      %s367 = scalar_lea.vmem %s6, %s366
      %s368 = smul.u32 %s23, 2
      %s369 = ssub.s32 %s368, 1
      %p370 = scmp.gt.s32.totalorder %s369, 0
      %s371 = scalar_select %p370, %s369, 0
      %p372 = scmp.lt.s32.totalorder %s22, 1
      %s373 = scalar_select %p372, %s22, 1
      %p374 = scmp.lt.s32.totalorder %s371, 1
      %s375 = scalar_select %p374, %s371, 1
      %s376 = smul.addr %s373, 2
      %s377 = sadd.s32 %s375, %s376
      %s378 = smul.addr %s377, 4
      %s379 = scalar_lea.vmem %s0, %s378
      %s380 = smul.u32 %s23, 2
      %s381 = ssub.s32 %s380, 1
      %p382 = scmp.gt.s32.totalorder %s381, 0
      %s383 = scalar_select %p382, %s381, 0
      %s384 = smul.u32 2, %s23
      %p385 = scmp.lt.s32.totalorder %s22, 1
      %s386 = scalar_select %p385, %s22, 1
      %p387 = scmp.lt.s32.totalorder %s384, 1
      %s388 = scalar_select %p387, %s384, 1
      %s389 = smul.addr %s386, 2
      %s390 = sadd.s32 %s388, %s389
      %s391 = smul.addr %s390, 4
      %s392 = scalar_lea.vmem %s1, %s391
      %s393 = smul.u32 2, %s23
      %s394 = sadd.s32 %s23, 1
      %s395 = smul.u32 %s394, 2
      %p396 = scmp.lt.s32.totalorder %s395, 1
      %s397 = scalar_select %p396, %s395, 1
      %p398 = scmp.lt.s32.totalorder %s22, 1
      %s399 = scalar_select %p398, %s22, 1
      %p400 = scmp.lt.s32.totalorder %s397, 1
      %s401 = scalar_select %p400, %s397, 1
      %s402 = smul.addr %s399, 2
      %s403 = sadd.s32 %s401, %s402
      %s404 = smul.addr %s403, 4
      %s405 = scalar_lea.vmem %s2, %s404
      %s406 = sadd.s32 %s23, 1
      %s407 = smul.u32 %s406, 2
      %p408 = scmp.lt.s32.totalorder %s407, 1
      %s409 = scalar_select %p408, %s407, 1
      %s410 = smul.u32 2, %s23
      %p411 = scmp.lt.s32.totalorder %s22, 1
      %s412 = scalar_select %p411, %s22, 1
      %p413 = scmp.lt.s32.totalorder %s410, 1
      %s414 = scalar_select %p413, %s410, 1
      %s415 = smul.addr %s412, 2
      %s416 = sadd.s32 %s414, %s415
      %s417 = smul.addr %s416, 8
      %s418 = scalar_lea.vmem %s4, %s417
      %s419 = smul.u32 2, %s23
      %p420 = scmp.lt.s32.totalorder %s22, 1
      %s421 = scalar_select %p420, %s22, 1
      %s422 = scalar_lea.vmem %s5, %s421
      %p423 = scmp.lt.s32.totalorder %s22, 1
      %s424 = scalar_select %p423, %s22, 1
      %s425 = scalar_lea.vmem %s6, %s424
      %v427 = vld [vmem:[%s392] sm:$0xf]
      %v428 = vld [vmem:[%s392 + $0x4] sm:$0xf]
      %v429 = vld [vmem:[%s379] sm:$0x8]
      %v430 = vld [vmem:[%s405] sm:$0x1]
      %p431 = scmp.eq.s32.totalorder %s23, 0
      %s432 = scalar_select %p431, 1, 0
      %v433 = vstv %s432
      %vm434 = vcmp.eq.s32.totalorder %v433, 1
      %v435 = vsel %vm434, 0, %v429
      %v436 = vsel %vm434, 0, %v430
      %s437 = scalar_lea.vmem %s3, 64
      %v438 = vld [vmem:[%s437] sm:$0xf]
      %v439 = vld [vmem:[%s437 + $0x4] sm:$0xf]
      %v440 = vld [vmem:[%s437 + $0x8] sm:$0xf]
      %v441 = vld [vmem:[%s437 + $0xc] sm:$0xf]
      %v442 = vld [vmem:[%s437 + $0x10] sm:$0xf]
      %v443 = vld [vmem:[%s437 + $0x14] sm:$0xf]
      %v444 = vld [vmem:[%s437 + $0x18] sm:$0xf]
      %v445 = vld [vmem:[%s437 + $0x1c] sm:$0xf]
      %v446 = vld [vmem:[%s437 + $0x20] sm:$0xf]
      %v447 = vld [vmem:[%s437 + $0x24] sm:$0xf]
      %v448 = vld [vmem:[%s437 + $0x28] sm:$0xf]
      %v449 = vld [vmem:[%s437 + $0x2c] sm:$0xf]
      %v450 = vld [vmem:[%s437 + $0x30] sm:$0xf]
      %v451 = vld [vmem:[%s437 + $0x34] sm:$0xf]
      %v452 = vld [vmem:[%s437 + $0x38] sm:$0xf]
      %v453 = vld [vmem:[%s437 + $0x3c] sm:$0xf]
      %v456 = vunpack.c.l.b16 %v427
      %v457 = vunpack.c.l.b16 %v428
      %v458 = vpack.c.b16 %v457, %v456
      %v476 = vunpack.c.l.b16 %v438
      %v477 = vunpack.c.l.b16 %v439
      %v478 = vunpack.c.l.b16 %v440
      %v479 = vunpack.c.l.b16 %v441
      %v480 = vunpack.c.l.b16 %v442
      %v481 = vunpack.c.l.b16 %v443
      %v482 = vunpack.c.l.b16 %v444
      %v483 = vunpack.c.l.b16 %v445
      %v484 = vunpack.c.l.b16 %v446
      %v485 = vunpack.c.l.b16 %v447
      %v486 = vunpack.c.l.b16 %v448
      %v487 = vunpack.c.l.b16 %v449
      %v488 = vunpack.c.l.b16 %v450
      %v489 = vunpack.c.l.b16 %v451
      %v490 = vunpack.c.l.b16 %v452
      %v491 = vunpack.c.l.b16 %v453
      %v492 = vpack.c.b16 %v477, %v476
      %v493 = vpack.c.b16 %v479, %v478
      %v494 = vpack.c.b16 %v481, %v480
      %v495 = vpack.c.b16 %v483, %v482
      %v496 = vpack.c.b16 %v485, %v484
      %v497 = vpack.c.b16 %v487, %v486
      %v498 = vpack.c.b16 %v489, %v488
      %v499 = vpack.c.b16 %v491, %v490
      %508 = vmatpush.bf16.msra.mxu0 %v499
      %509 = vmatpush.bf16.msra.mxu0 %v498
      %510 = vmatpush.bf16.msra.mxu0 %v497
      %511 = vmatpush.bf16.msra.mxu0 %v496
      %512 = vmatpush.bf16.msra.mxu0 %v495
      %513 = vmatpush.bf16.msra.mxu0 %v494
      %514 = vmatpush.bf16.msra.mxu0 %v493
      %515 = vmatpush.bf16.msra.mxu0 %v492
      %516 = vmatmul.bf16.gmra.mxu0 %v458
      %v517 = vpop.f32.mrf.mxu0
      %v518 = vadd.f32 0.0, %v517
      %v519 = vpop.f32.mrf.mxu0
      %v520 = vadd.f32 0.0, %v519
      %521 = vdwg.mxu0
      %522 = vst [vmem:[%s418] sm:$0xff] %v518
      %523 = vst [vmem:[%s418 + $0x8] sm:$0xff] %v520
      %v524 = vld [vmem:[%s418] sm:$0x1]
      %v525 = vld [vmem:[%s3] sm:$0xf]
      %v526 = vld [vmem:[%s3 + $0x4] sm:$0xf]
      %v527 = vld [vmem:[%s3 + $0x8] sm:$0xf]
      %v528 = vld [vmem:[%s3 + $0xc] sm:$0xf]
      %v529 = vld [vmem:[%s3 + $0x10] sm:$0xf]
      %v530 = vld [vmem:[%s3 + $0x14] sm:$0xf]
      %v531 = vld [vmem:[%s3 + $0x18] sm:$0xf]
      %v532 = vld [vmem:[%s3 + $0x1c] sm:$0xf]
      %v533 = vld [vmem:[%s3 + $0x20] sm:$0xf]
      %v534 = vld [vmem:[%s3 + $0x24] sm:$0xf]
      %v535 = vld [vmem:[%s3 + $0x28] sm:$0xf]
      %v536 = vld [vmem:[%s3 + $0x2c] sm:$0xf]
      %v537 = vld [vmem:[%s3 + $0x30] sm:$0xf]
      %v538 = vld [vmem:[%s3 + $0x34] sm:$0xf]
      %v539 = vld [vmem:[%s3 + $0x38] sm:$0xf]
      %v540 = vld [vmem:[%s3 + $0x3c] sm:$0xf]
      %v542 = vunpack.c.l.b16 %v435
      %v543 = vpack.c.b16 %v542, %v542
      %v545 = vshrl.u32 %v543, 16
      %v547 = vrot.slane %v545, 3
      %v565 = vunpack.c.l.b16 %v525
      %v566 = vunpack.c.l.b16 %v526
      %v567 = vunpack.c.l.b16 %v527
      %v568 = vunpack.c.l.b16 %v528
      %v569 = vunpack.c.l.b16 %v529
      %v570 = vunpack.c.l.b16 %v530
      %v571 = vunpack.c.l.b16 %v531
      %v572 = vunpack.c.l.b16 %v532
      %v573 = vunpack.c.l.b16 %v533
      %v574 = vunpack.c.l.b16 %v534
      %v575 = vunpack.c.l.b16 %v535
      %v576 = vunpack.c.l.b16 %v536
      %v577 = vunpack.c.l.b16 %v537
      %v578 = vunpack.c.l.b16 %v538
      %v579 = vunpack.c.l.b16 %v539
      %v580 = vunpack.c.l.b16 %v540
      %v581 = vpack.c.b16 %v566, %v565
      %v582 = vpack.c.b16 %v568, %v567
      %v583 = vpack.c.b16 %v570, %v569
      %v584 = vpack.c.b16 %v572, %v571
      %v585 = vpack.c.b16 %v574, %v573
      %v586 = vpack.c.b16 %v576, %v575
      %v587 = vpack.c.b16 %v578, %v577
      %v588 = vpack.c.b16 %v580, %v579
      %597 = vmatpush.bf16.msra.mxu0 %v588
      %598 = vmatpush.bf16.msra.mxu0 %v587
      %599 = vmatpush.bf16.msra.mxu0 %v586
      %600 = vmatpush.bf16.msra.mxu0 %v585
      %601 = vmatpush.bf16.msra.mxu0 %v584
      %602 = vmatpush.bf16.msra.mxu0 %v583
      %603 = vmatpush.bf16.msra.mxu0 %v582
      %604 = vmatpush.bf16.msra.mxu0 %v581
      %605 = vmatmul.bf16.gmra.mxu0 %v547
      %v606 = vpop.f32.mrf.mxu0
      %v607 = vadd.f32 0.0, %v606
      %v608 = vpop.f32.mrf.mxu0
      %609 = vdwg.mxu0
      %v610 = vadd.f32 %v524, %v607
      %611 = vst [vmem:[%s418] sm:$0x1] %v610
      %v612 = vld [vmem:[%s418 + $0xf] sm:$0x1]
      %s613 = scalar_lea.vmem %s3, 128
      %v614 = vld [vmem:[%s613] sm:$0xf]
      %v615 = vld [vmem:[%s613 + $0x4] sm:$0xf]
      %v616 = vld [vmem:[%s613 + $0x8] sm:$0xf]
      %v617 = vld [vmem:[%s613 + $0xc] sm:$0xf]
      %v618 = vld [vmem:[%s613 + $0x10] sm:$0xf]
      %v619 = vld [vmem:[%s613 + $0x14] sm:$0xf]
      %v620 = vld [vmem:[%s613 + $0x18] sm:$0xf]
      %v621 = vld [vmem:[%s613 + $0x1c] sm:$0xf]
      %v622 = vld [vmem:[%s613 + $0x20] sm:$0xf]
      %v623 = vld [vmem:[%s613 + $0x24] sm:$0xf]
      %v624 = vld [vmem:[%s613 + $0x28] sm:$0xf]
      %v625 = vld [vmem:[%s613 + $0x2c] sm:$0xf]
      %v626 = vld [vmem:[%s613 + $0x30] sm:$0xf]
      %v627 = vld [vmem:[%s613 + $0x34] sm:$0xf]
      %v628 = vld [vmem:[%s613 + $0x38] sm:$0xf]
      %v629 = vld [vmem:[%s613 + $0x3c] sm:$0xf]
      %v646 = vunpack.c.l.b16 %v614
      %v647 = vunpack.c.l.b16 %v615
      %v648 = vunpack.c.l.b16 %v616
      %v649 = vunpack.c.l.b16 %v617
      %v650 = vunpack.c.l.b16 %v618
      %v651 = vunpack.c.l.b16 %v619
      %v652 = vunpack.c.l.b16 %v620
      %v653 = vunpack.c.l.b16 %v621
      %v654 = vunpack.c.l.b16 %v622
      %v655 = vunpack.c.l.b16 %v623
      %v656 = vunpack.c.l.b16 %v624
      %v657 = vunpack.c.l.b16 %v625
      %v658 = vunpack.c.l.b16 %v626
      %v659 = vunpack.c.l.b16 %v627
      %v660 = vunpack.c.l.b16 %v628
      %v661 = vunpack.c.l.b16 %v629
      %v662 = vpack.c.b16 %v647, %v646
      %v663 = vpack.c.b16 %v649, %v648
      %v664 = vpack.c.b16 %v651, %v650
      %v665 = vpack.c.b16 %v653, %v652
      %v666 = vpack.c.b16 %v655, %v654
      %v667 = vpack.c.b16 %v657, %v656
      %v668 = vpack.c.b16 %v659, %v658
      %v669 = vpack.c.b16 %v661, %v660
      %678 = vmatpush.bf16.msra.mxu0 %v669
      %679 = vmatpush.bf16.msra.mxu0 %v668
      %680 = vmatpush.bf16.msra.mxu0 %v667
      %681 = vmatpush.bf16.msra.mxu0 %v666
      %682 = vmatpush.bf16.msra.mxu0 %v665
      %683 = vmatpush.bf16.msra.mxu0 %v664
      %684 = vmatpush.bf16.msra.mxu0 %v663
      %685 = vmatpush.bf16.msra.mxu0 %v662
      %686 = vmatmul.bf16.gmra.mxu0 %v436
      %v687 = vpop.f32.mrf.mxu0
      %v688 = vadd.f32 0.0, %v687
      %v689 = vpop.f32.mrf.mxu0
      %690 = vdwg.mxu0
      %v691 = vadd.f32 %v612, %v688
      %692 = vst [vmem:[%s418 + $0xf] sm:$0x1] %v691
      %v693 = vld [vmem:[%s418 + $0x1] sm:$0xff]
      %v694 = vld [vmem:[%s418 + $0x9] sm:$0x7f]
      %v695 = vld [vmem:[%s3] sm:$0xf]
      %v696 = vld [vmem:[%s3 + $0x4] sm:$0xf]
      %v697 = vld [vmem:[%s3 + $0x8] sm:$0xf]
      %v698 = vld [vmem:[%s3 + $0xc] sm:$0xf]
      %v699 = vld [vmem:[%s3 + $0x10] sm:$0xf]
      %v700 = vld [vmem:[%s3 + $0x14] sm:$0xf]
      %v701 = vld [vmem:[%s3 + $0x18] sm:$0xf]
      %v702 = vld [vmem:[%s3 + $0x1c] sm:$0xf]
      %v703 = vld [vmem:[%s3 + $0x20] sm:$0xf]
      %v704 = vld [vmem:[%s3 + $0x24] sm:$0xf]
      %v705 = vld [vmem:[%s3 + $0x28] sm:$0xf]
      %v706 = vld [vmem:[%s3 + $0x2c] sm:$0xf]
      %v707 = vld [vmem:[%s3 + $0x30] sm:$0xf]
      %v708 = vld [vmem:[%s3 + $0x34] sm:$0xf]
      %v709 = vld [vmem:[%s3 + $0x38] sm:$0xf]
      %v710 = vld [vmem:[%s3 + $0x3c] sm:$0xf]
      %v727 = vunpack.c.l.b16 %v695
      %v728 = vunpack.c.l.b16 %v696
      %v729 = vunpack.c.l.b16 %v697
      %v730 = vunpack.c.l.b16 %v698
      %v731 = vunpack.c.l.b16 %v699
      %v732 = vunpack.c.l.b16 %v700
      %v733 = vunpack.c.l.b16 %v701
      %v734 = vunpack.c.l.b16 %v702
      %v735 = vunpack.c.l.b16 %v703
      %v736 = vunpack.c.l.b16 %v704
      %v737 = vunpack.c.l.b16 %v705
      %v738 = vunpack.c.l.b16 %v706
      %v739 = vunpack.c.l.b16 %v707
      %v740 = vunpack.c.l.b16 %v708
      %v741 = vunpack.c.l.b16 %v709
      %v742 = vunpack.c.l.b16 %v710
      %v743 = vpack.c.b16 %v728, %v727
      %v744 = vpack.c.b16 %v730, %v729
      %v745 = vpack.c.b16 %v732, %v731
      %v746 = vpack.c.b16 %v734, %v733
      %v747 = vpack.c.b16 %v736, %v735
      %v748 = vpack.c.b16 %v738, %v737
      %v749 = vpack.c.b16 %v740, %v739
      %v750 = vpack.c.b16 %v742, %v741
      %759 = vmatpush.bf16.msra.mxu0 %v750
      %760 = vmatpush.bf16.msra.mxu0 %v749
      %761 = vmatpush.bf16.msra.mxu0 %v748
      %762 = vmatpush.bf16.msra.mxu0 %v747
      %763 = vmatpush.bf16.msra.mxu0 %v746
      %764 = vmatpush.bf16.msra.mxu0 %v745
      %765 = vmatpush.bf16.msra.mxu0 %v744
      %766 = vmatpush.bf16.msra.mxu0 %v743
      %767 = vmatmul.bf16.gmra.mxu0 %v458
      %v768 = vpop.f32.mrf.mxu0
      %v769 = vadd.f32 0.0, %v768
      %v770 = vpop.f32.mrf.mxu0
      %v771 = vadd.f32 0.0, %v770
      %772 = vdwg.mxu0
      %v773 = vadd.f32 %v693, %v769
      %v774 = vadd.f32 %v694, %v771
      %775 = vst [vmem:[%s418 + $0x1] sm:$0xff] %v773
      %776 = vst [vmem:[%s418 + $0x9] sm:$0x7f] %v774
      %v777 = vld [vmem:[%s418] sm:$0xff]
      %v778 = vld [vmem:[%s418 + $0x8] sm:$0x7f]
      %v779 = vld [vmem:[%s613] sm:$0xf]
      %v780 = vld [vmem:[%s613 + $0x4] sm:$0xf]
      %v781 = vld [vmem:[%s613 + $0x8] sm:$0xf]
      %v782 = vld [vmem:[%s613 + $0xc] sm:$0xf]
      %v783 = vld [vmem:[%s613 + $0x10] sm:$0xf]
      %v784 = vld [vmem:[%s613 + $0x14] sm:$0xf]
      %v785 = vld [vmem:[%s613 + $0x18] sm:$0xf]
      %v786 = vld [vmem:[%s613 + $0x1c] sm:$0xf]
      %v787 = vld [vmem:[%s613 + $0x20] sm:$0xf]
      %v788 = vld [vmem:[%s613 + $0x24] sm:$0xf]
      %v789 = vld [vmem:[%s613 + $0x28] sm:$0xf]
      %v790 = vld [vmem:[%s613 + $0x2c] sm:$0xf]
      %v791 = vld [vmem:[%s613 + $0x30] sm:$0xf]
      %v792 = vld [vmem:[%s613 + $0x34] sm:$0xf]
      %v793 = vld [vmem:[%s613 + $0x38] sm:$0xf]
      %v794 = vld [vmem:[%s613 + $0x3c] sm:$0xf]
      %v796 = vshrl.u32 %v458, 16
      %v798 = vshll.u32 %v458, 16
      %v800 = vrot.slane %v798, 1
      %v801 = vor.u32 %v796, %v800
      %v819 = vunpack.c.l.b16 %v779
      %v820 = vunpack.c.l.b16 %v780
      %v821 = vunpack.c.l.b16 %v781
      %v822 = vunpack.c.l.b16 %v782
      %v823 = vunpack.c.l.b16 %v783
      %v824 = vunpack.c.l.b16 %v784
      %v825 = vunpack.c.l.b16 %v785
      %v826 = vunpack.c.l.b16 %v786
      %v827 = vunpack.c.l.b16 %v787
      %v828 = vunpack.c.l.b16 %v788
      %v829 = vunpack.c.l.b16 %v789
      %v830 = vunpack.c.l.b16 %v790
      %v831 = vunpack.c.l.b16 %v791
      %v832 = vunpack.c.l.b16 %v792
      %v833 = vunpack.c.l.b16 %v793
      %v834 = vunpack.c.l.b16 %v794
      %v835 = vpack.c.b16 %v820, %v819
      %v836 = vpack.c.b16 %v822, %v821
      %v837 = vpack.c.b16 %v824, %v823
      %v838 = vpack.c.b16 %v826, %v825
      %v839 = vpack.c.b16 %v828, %v827
      %v840 = vpack.c.b16 %v830, %v829
      %v841 = vpack.c.b16 %v832, %v831
      %v842 = vpack.c.b16 %v834, %v833
      %851 = vmatpush.bf16.msra.mxu0 %v842
      %852 = vmatpush.bf16.msra.mxu0 %v841
      %853 = vmatpush.bf16.msra.mxu0 %v840
      %854 = vmatpush.bf16.msra.mxu0 %v839
      %855 = vmatpush.bf16.msra.mxu0 %v838
      %856 = vmatpush.bf16.msra.mxu0 %v837
      %857 = vmatpush.bf16.msra.mxu0 %v836
      %858 = vmatpush.bf16.msra.mxu0 %v835
      %859 = vmatmul.bf16.gmra.mxu0 %v801
      %v860 = vpop.f32.mrf.mxu0
      %v861 = vadd.f32 0.0, %v860
      %v862 = vpop.f32.mrf.mxu0
      %v863 = vadd.f32 0.0, %v862
      %864 = vdwg.mxu0
      %v865 = vadd.f32 %v777, %v861
      %v866 = vadd.f32 %v778, %v863
      %867 = vst [vmem:[%s418] sm:$0xff] %v865
      %868 = vst [vmem:[%s418 + $0x8] sm:$0x7f] %v866
      // Predicated region
      $region37: #{double_conv_forward.6} parent=35 // pred_check
        %p869 = pneg %p431
      $region38: #{double_conv_forward.6} parent=35 // pred_check_branch
        %871 = sbr.rel (%p869) target = $region40
      $region39: #{double_conv_forward.6} parent=35 // pred_region
        %872 = vst [vmem:[%s422] sm:$0x1] 0.0
        %873 = vst [vmem:[%s425] sm:$0x1] 0.0
      $region40: #{double_conv_forward.6} parent=35 // pred_fallthru
        _
      %v874 = vld [vmem:[%s418] sm:$0xff]
      %v875 = vld [vmem:[%s418 + $0x8] sm:$0xff]
      %v876 = vld [vmem:[%s422] sm:$0x1]
      %v877 = vadd.f32 %v874, %v875
      %v878 = vrot.slane %v877, 4
      %v879 = vadd.f32 %v877, %v878
      %v880 = vrot.slane %v879, 2
      %v881 = vadd.f32 %v879, %v880
      %v882 = vrot.slane %v881, 1
      %v883 = vadd.f32 %v881, %v882
      %v884 = vadd.f32 %v876, %v883
      %885 = vst [vmem:[%s422] sm:$0x1] %v884
      %v886 = vld [vmem:[%s425] sm:$0x1]
      %v887 = vmul.f32 %v874, %v874
      %v888 = vmul.f32 %v875, %v875
      %v889 = vadd.f32 %v887, %v888
      %v890 = vrot.slane %v889, 4
      %v891 = vadd.f32 %v889, %v890
      %v892 = vrot.slane %v891, 2
      %v893 = vadd.f32 %v891, %v892
      %v894 = vrot.slane %v893, 1
      %v895 = vadd.f32 %v893, %v894
      %v896 = vadd.f32 %v886, %v895
      %897 = vst [vmem:[%s425] sm:$0x1] %v896
      %s898 = smul.u32 2, %s23
      %p899 = scmp.lt.s32.totalorder %s22, 1
      %s900 = scalar_select %p899, %s22, 1
      %p901 = scmp.lt.s32.totalorder %s898, 1
      %s902 = scalar_select %p901, %s898, 1
      %s903 = smul.addr %s900, 2
      %s904 = sadd.s32 %s902, %s903
      %s905 = smul.addr %s904, 8
      %s906 = scalar_lea.vmem %s4, %s905
      %p907 = scmp.lt.s32.totalorder %s22, 1
      %s908 = scalar_select %p907, %s22, 1
      %s909 = scalar_lea.vmem %s5, %s908
      %p910 = scmp.lt.s32.totalorder %s22, 1
      %s911 = scalar_select %p910, %s22, 1
      %s912 = scalar_lea.vmem %s6, %s911
      // Predicated region
      $region41: #{double_conv_forward.6} parent=35 // pred_check
        %p913 = pneg %p171
      $region42: #{double_conv_forward.6} parent=35 // pred_check_branch
        %915 = sbr.rel (%p913) target = $region44
      $region43: #{double_conv_forward.6} parent=35 // pred_region
        %s916 = smul.u32 2, %s23
      $region44: #{double_conv_forward.6} parent=35 // pred_fallthru
        _
      // Predicated region
      $region45: #{double_conv_forward.6} parent=35 // pred_check
        %p917 = pneg %p197
      $region46: #{double_conv_forward.6} parent=35 // pred_check_branch
        %919 = sbr.rel (%p917) target = $region48
      $region47: #{double_conv_forward.6} parent=35 // pred_region
        _
      $region48: #{double_conv_forward.6} parent=35 // pred_fallthru
        _
      // Predicated region
      $region49: #{double_conv_forward.6} parent=35 // pred_check
        %p920 = pneg %p223
      $region50: #{double_conv_forward.6} parent=35 // pred_check_branch
        %922 = sbr.rel (%p920) target = $region52
      $region51: #{double_conv_forward.6} parent=35 // pred_region
        _
      $region52: #{double_conv_forward.6} parent=35 // pred_fallthru
        _
    $region36: #{double_conv_forward.6} parent=5 // pred_fallthru
      _
    %p923 = scmp.le.s32.totalorder 2, %s13
    // Predicated region
    $region53: #{double_conv_forward.6} parent=5 // pred_check
      %p924 = pneg %p923
    $region54: #{double_conv_forward.6} parent=5 // pred_check_branch
      %926 = sbr.rel (%p924) target = $region56
    $region55: #{double_conv_forward.6} parent=5 // pred_region
      %s927 = ssub.s32 %s13, 2
      // Predicated region
      $region57: #{double_conv_forward.6} parent=55 // pred_check
        %p928 = pneg %p177
      $region58: #{double_conv_forward.6} parent=55 // pred_check_branch
        %930 = sbr.rel (%p928) target = $region60
      $region59: #{double_conv_forward.6} parent=55 // pred_region
        %s931 = smul.u32 2, %s25
        %p932 = scmp.lt.s32.totalorder %s24, 1
        %s933 = scalar_select %p932, %s24, 1
        %p934 = scmp.lt.s32.totalorder %s931, 1
        %s935 = scalar_select %p934, %s931, 1
        %s936 = smul.addr %s933, 2
        %s937 = sadd.s32 %s935, %s936
        %s938 = smul.addr %s937, 8
        %s939 = scalar_lea.vmem %s4, %s938
      $region60: #{double_conv_forward.6} parent=55 // pred_fallthru
        _
      // Predicated region
      $region61: #{double_conv_forward.6} parent=55 // pred_check
        %p940 = pneg %p203
      $region62: #{double_conv_forward.6} parent=55 // pred_check_branch
        %942 = sbr.rel (%p940) target = $region64
      $region63: #{double_conv_forward.6} parent=55 // pred_region
        %p943 = scmp.lt.s32.totalorder %s24, 1
        %s944 = scalar_select %p943, %s24, 1
        %s945 = scalar_lea.vmem %s5, %s944
      $region64: #{double_conv_forward.6} parent=55 // pred_fallthru
        _
      // Predicated region
      $region65: #{double_conv_forward.6} parent=55 // pred_check
        %p946 = pneg %p229
      $region66: #{double_conv_forward.6} parent=55 // pred_check_branch
        %948 = sbr.rel (%p946) target = $region68
      $region67: #{double_conv_forward.6} parent=55 // pred_region
        %p949 = scmp.lt.s32.totalorder %s24, 1
        %s950 = scalar_select %p949, %s24, 1
        %s951 = scalar_lea.vmem %s6, %s950
      $region68: #{double_conv_forward.6} parent=55 // pred_fallthru
        _
    $region56: #{double_conv_forward.6} parent=5 // pred_fallthru
      _
  $region6: #{double_conv_forward.6} parent=0 // loop_footer
    %s17 = sadd.s32 1, %s13
  $region7: #{double_conv_forward.6} parent=0 // loop_footer_branch
    %12 = sbr.rel target = $region3
  $region8: #{double_conv_forward.6} parent=0 // loop_exit
    _

// kernel: double_conv_forward.7
$region0: #{double_conv_forward.7}
  #allocation0 [shape = 'u32[]', space=smem, size = 0x4, offset = 0x4, fixed_abs, tag = 'smem constant byte address 0x4 - core index']
  #allocation1 [shape = 'u32[72,128]{1,0:T(1,128)}', space=vmem, size = 0x9000, scoped, tag = 'internal scratch']
  %s0 = inlined_call_operand.vmem [shape: f32[2,16,128], index: 0, kind: input, shape index: {}]
  %s1 = inlined_call_operand.vmem [shape: f32[1,1,128], index: 1, kind: input, shape index: {}]
  %s2 = inlined_call_operand.vmem [shape: f32[1,1,128], index: 2, kind: input, shape index: {}]
  %s3 = inlined_call_operand.vmem [shape: f32[2,16,128], index: 3, kind: output, shape index: {}]
  %s4 = sld [smem:[#allocation0]]
  $region45: #{double_conv_forward.7} parent=0
    _
  %s6 = ssub.s32 1, %s4
  %s7 = scalar_select 0, %s6, %s4
  loop: start=0, step=1, limit=4
  $region2: #{double_conv_forward.7} parent=0 // loop_pre_header
    _
  $region3: #{double_conv_forward.7} parent=0 // loop_header
    %s9 = sphi 0, %s13
    %p10 = scmp.ge.s32.totalorder %s9, 4
    %s16 = sphi 0, %s28
    %s17 = sphi 0, %s24
    %s18 = sphi 0, %s16
    %s19 = sphi 0, %s17
    %s20 = sphi 0, %s18
    %s21 = sphi 0, %s19
    %s33 = sphi 0, %s35
    %s36 = sphi 0, %s33
    %s37 = sphi 0, %s36
    %s53 = sphi 0, %s37
    %s57 = sphi 0, %s57
    %s59 = sphi 0, %s57
    %s60 = sphi 0, %s59
    %s74 = sphi 0, %s60
    %s78 = sphi 0, %s78
    %s80 = sphi 0, %s78
    %s81 = sphi 0, %s80
    %s95 = sphi 0, %s81
    %s103 = sphi 0, %s105
    %s106 = sphi 0, %s103
    %s107 = sphi 0, %s106
    %s123 = sphi 0, %s107
  $region4: #{double_conv_forward.7} parent=0 // loop_header_branch
    %12 = sbr.rel (%p10) target = $region8
  $region5: #{double_conv_forward.7} parent=0 // loop_body
    %s14 = ssub.s32 %s9, 1
    %s15 = ssub.s32 %s9, 2
    %s22 = sadd.s32 1, %s17
    %p23 = scmp.ge.s32.totalorder %s22, 1
    %s24 = scalar_select %p23, 0, %s22
    %s25 = sadd.s32 1, %s16
    %s26 = scalar_select %p23, %s25, %s16
    %p27 = scmp.ge.s32.totalorder %s26, 2
    %s28 = scalar_select %p27, 0, %s26
    %s29 = ssub.s32 %s16, %s28
    %s30 = ssub.s32 %s17, %s24
    %s31 = sor.u32 %s29, %s30
    %p32 = scmp.eq.s32.totalorder %s31, 0
    %s34 = sadd.s32 %s33, 1
    %s35 = scalar_select %p32, %s33, %s34
    %p38 = pneg %p32
    %p39 = scmp.eq.s32.totalorder %s9, 1
    %p40 = por %p38, %p39
    %p41 = scmp.ne.s32.totalorder %s33, %s36
    %p42 = scmp.eq.s32.totalorder %s9, 0
    %p43 = por %p41, %p42
    %p44 = scmp.ne.s32.totalorder %s33, %s36
    %p45 = scmp.eq.s32.totalorder %s14, 1
    %p46 = por %p44, %p45
    %p47 = scmp.ne.s32.totalorder %s36, %s37
    %p48 = scmp.eq.s32.totalorder %s14, 0
    %p49 = por %p47, %p48
    %p50 = scmp.ne.s32.totalorder %s36, %s37
    %p51 = scmp.eq.s32.totalorder %s15, 1
    %p52 = por %p50, %p51
    %p54 = scmp.ne.s32.totalorder %s37, %s53
    %p55 = scmp.eq.s32.totalorder %s15, 0
    %p56 = por %p54, %p55
    %s58 = sadd.s32 %s57, 1
    %p61 = scmp.eq.s32.totalorder %s9, 1
    %p62 = scmp.ne.s32.totalorder %s57, %s59
    %p63 = scmp.eq.s32.totalorder %s9, 0
    %p64 = por %p62, %p63
    %p65 = scmp.ne.s32.totalorder %s57, %s59
    %p66 = scmp.eq.s32.totalorder %s14, 1
    %p67 = por %p65, %p66
    %p68 = scmp.ne.s32.totalorder %s59, %s60
    %p69 = scmp.eq.s32.totalorder %s14, 0
    %p70 = por %p68, %p69
    %p71 = scmp.ne.s32.totalorder %s59, %s60
    %p72 = scmp.eq.s32.totalorder %s15, 1
    %p73 = por %p71, %p72
    %p75 = scmp.ne.s32.totalorder %s60, %s74
    %p76 = scmp.eq.s32.totalorder %s15, 0
    %p77 = por %p75, %p76
    %s79 = sadd.s32 %s78, 1
    %p82 = scmp.eq.s32.totalorder %s9, 1
    %p83 = scmp.ne.s32.totalorder %s78, %s80
    %p84 = scmp.eq.s32.totalorder %s9, 0
    %p85 = por %p83, %p84
    %p86 = scmp.ne.s32.totalorder %s78, %s80
    %p87 = scmp.eq.s32.totalorder %s14, 1
    %p88 = por %p86, %p87
    %p89 = scmp.ne.s32.totalorder %s80, %s81
    %p90 = scmp.eq.s32.totalorder %s14, 0
    %p91 = por %p89, %p90
    %p92 = scmp.ne.s32.totalorder %s80, %s81
    %p93 = scmp.eq.s32.totalorder %s15, 1
    %p94 = por %p92, %p93
    %p96 = scmp.ne.s32.totalorder %s81, %s95
    %p97 = scmp.eq.s32.totalorder %s15, 0
    %p98 = por %p96, %p97
    %s99 = ssub.s32 %s16, %s28
    %s100 = ssub.s32 %s17, %s24
    %s101 = sor.u32 %s99, %s100
    %p102 = scmp.eq.s32.totalorder %s101, 0
    %s104 = sadd.s32 %s103, 1
    %s105 = scalar_select %p102, %s103, %s104
    %p108 = pneg %p102
    %p109 = scmp.eq.s32.totalorder %s9, 1
    %p110 = por %p108, %p109
    %p111 = scmp.ne.s32.totalorder %s103, %s106
    %p112 = scmp.eq.s32.totalorder %s9, 0
    %p113 = por %p111, %p112
    %p114 = scmp.ne.s32.totalorder %s103, %s106
    %p115 = scmp.eq.s32.totalorder %s14, 1
    %p116 = por %p114, %p115
    %p117 = scmp.ne.s32.totalorder %s106, %s107
    %p118 = scmp.eq.s32.totalorder %s14, 0
    %p119 = por %p117, %p118
    %p120 = scmp.ne.s32.totalorder %s106, %s107
    %p121 = scmp.eq.s32.totalorder %s15, 1
    %p122 = por %p120, %p121
    %p124 = scmp.ne.s32.totalorder %s107, %s123
    %p125 = scmp.eq.s32.totalorder %s15, 0
    %p126 = por %p124, %p125
    %p127 = scmp.le.s32.totalorder 1, %s9
    %p128 = scmp.lt.s32.totalorder %s9, 3
    %p129 = pnand %p127, %p128
    %p130 = pneg %p129
    // Predicated region
    $region9: #{double_conv_forward.7} parent=5 // pred_check
      _
    $region10: #{double_conv_forward.7} parent=5 // pred_check_branch
      %132 = sbr.rel (%p129) target = $region12
    $region11: #{double_conv_forward.7} parent=5 // pred_region
      %s133 = ssub.s32 %s9, 1
      // Predicated region
      $region13: #{double_conv_forward.7} parent=11 // pred_check
        %p134 = pneg %p70
      $region14: #{double_conv_forward.7} parent=11 // pred_check_branch
        %136 = sbr.rel (%p134) target = $region16
      $region15: #{double_conv_forward.7} parent=11 // pred_region
        _
      $region16: #{double_conv_forward.7} parent=11 // pred_fallthru
        _
      // Predicated region
      $region17: #{double_conv_forward.7} parent=11 // pred_check
        %p137 = pneg %p91
      $region18: #{double_conv_forward.7} parent=11 // pred_check_branch
        %139 = sbr.rel (%p137) target = $region20
      $region19: #{double_conv_forward.7} parent=11 // pred_region
        _
      $region20: #{double_conv_forward.7} parent=11 // pred_fallthru
        _
    $region12: #{double_conv_forward.7} parent=5 // pred_fallthru
      _
    %p140 = scmp.lt.s32.totalorder %s9, 2
    // Predicated region
    $region21: #{double_conv_forward.7} parent=5 // pred_check
      %p141 = pneg %p140
    $region22: #{double_conv_forward.7} parent=5 // pred_check_branch
      %143 = sbr.rel (%p141) target = $region24
    $region23: #{double_conv_forward.7} parent=5 // pred_region
      // Predicated region
      $region25: #{double_conv_forward.7} parent=23 // pred_check
        %p144 = pneg %p43
      $region26: #{double_conv_forward.7} parent=23 // pred_check_branch
        %146 = sbr.rel (%p144) target = $region28
      $region27: #{double_conv_forward.7} parent=23 // pred_region
        %s147 = smul.u32 2, %s17
        %p148 = scmp.lt.s32.totalorder %s16, 1
        %s149 = scalar_select %p148, %s16, 1
        %p150 = scmp.lt.s32.totalorder %s147, 1
        %s151 = scalar_select %p150, %s147, 1
        %s152 = smul.addr %s149, 2
        %s153 = sadd.s32 %s151, %s152
        %s154 = smul.addr %s153, 8
        %s155 = scalar_lea.vmem %s0, %s154
        %s156 = smul.u32 2, %s17
      $region28: #{double_conv_forward.7} parent=23 // pred_fallthru
        _
    $region24: #{double_conv_forward.7} parent=5 // pred_fallthru
      _
    %p157 = scmp.le.s32.totalorder 1, %s9
    %p158 = scmp.lt.s32.totalorder %s9, 3
    %p159 = pnand %p157, %p158
    %p160 = pneg %p159
    // Predicated region
    $region29: #{double_conv_forward.7} parent=5 // pred_check
      _
    $region30: #{double_conv_forward.7} parent=5 // pred_check_branch
      %162 = sbr.rel (%p159) target = $region32
    $region31: #{double_conv_forward.7} parent=5 // pred_region
      %s163 = ssub.s32 %s9, 1
      %s164 = smul.u32 2, %s19
      %p165 = scmp.lt.s32.totalorder %s18, 1
      %s166 = scalar_select %p165, %s18, 1
      %p167 = scmp.lt.s32.totalorder %s164, 1
      %s168 = scalar_select %p167, %s164, 1
      %s169 = smul.addr %s166, 2
      %s170 = sadd.s32 %s168, %s169
      %s171 = smul.addr %s170, 8
      %s172 = scalar_lea.vmem %s0, %s171
      %p173 = pneg %p49
      %p174 = pneg %p46
      %p175 = pneg %p70
      %p176 = pneg %p67
      %p177 = pneg %p91
      %p178 = pneg %p88
      %p179 = pneg %p119
      %p180 = pneg %p116
      %s181 = smul.u32 2, %s19
      %p182 = scmp.lt.s32.totalorder %s18, 1
      %s183 = scalar_select %p182, %s18, 1
      %p184 = scmp.lt.s32.totalorder %s181, 1
      %s185 = scalar_select %p184, %s181, 1
      %s186 = smul.addr %s183, 2
      %s187 = sadd.s32 %s185, %s186
      %s188 = smul.addr %s187, 8
      %s189 = scalar_lea.vmem %s3, %s188
      %s190 = smul.u32 2, %s19
      %p191 = scmp.lt.s32.totalorder %s18, 1
      %s192 = scalar_select %p191, %s18, 1
      %p193 = scmp.lt.s32.totalorder %s190, 1
      %s194 = scalar_select %p193, %s190, 1
      %s195 = smul.addr %s192, 2
      %s196 = sadd.s32 %s194, %s195
      %s197 = smul.addr %s196, 8
      %s198 = scalar_lea.vmem %s0, %s197
      %s199 = smul.u32 2, %s19
      %s200 = smul.u32 2, %s19
      %p201 = scmp.lt.s32.totalorder %s18, 1
      %s202 = scalar_select %p201, %s18, 1
      %p203 = scmp.lt.s32.totalorder %s200, 1
      %s204 = scalar_select %p203, %s200, 1
      %s205 = smul.addr %s202, 2
      %s206 = sadd.s32 %s204, %s205
      %s207 = smul.addr %s206, 8
      %s208 = scalar_lea.vmem %s3, %s207
      %s209 = smul.u32 2, %s19
      %v210 = vld [vmem:[%s198] sm:$0xff]
      %v211 = vld [vmem:[%s198 + $0x8] sm:$0xff]
      %v212 = vld [vmem:[%s1] sm:$0x1]
      %v214 = vperm.slane %v212, 0
      %v216 = vmul.f32 %v210, %v214
      %v217 = vmul.f32 %v211, %v214
      %v218 = vld [vmem:[%s2] sm:$0x1]
      %v220 = vperm.slane %v218, 0
      %v222 = vadd.f32 %v216, %v220
      %v223 = vadd.f32 %v217, %v220
      %v224 = vmax.f32 %v222, 0.0
      %v225 = vmax.f32 %v223, 0.0
      %226 = vst [vmem:[%s208] sm:$0xff] %v224
      %227 = vst [vmem:[%s208 + $0x8] sm:$0xff] %v225
      %s228 = smul.u32 2, %s19
      %p229 = scmp.lt.s32.totalorder %s18, 1
      %s230 = scalar_select %p229, %s18, 1
      %p231 = scmp.lt.s32.totalorder %s228, 1
      %s232 = scalar_select %p231, %s228, 1
      %s233 = smul.addr %s230, 2
      %s234 = sadd.s32 %s232, %s233
      %s235 = smul.addr %s234, 8
      %s236 = scalar_lea.vmem %s3, %s235
      // Predicated region
      $region33: #{double_conv_forward.7} parent=31 // pred_check
        %p237 = pneg %p116
      $region34: #{double_conv_forward.7} parent=31 // pred_check_branch
        %239 = sbr.rel (%p237) target = $region36
      $region35: #{double_conv_forward.7} parent=31 // pred_region
        %s240 = smul.u32 2, %s19
      $region36: #{double_conv_forward.7} parent=31 // pred_fallthru
        _
    $region32: #{double_conv_forward.7} parent=5 // pred_fallthru
      _
    %p241 = scmp.le.s32.totalorder 2, %s9
    // Predicated region
    $region37: #{double_conv_forward.7} parent=5 // pred_check
      %p242 = pneg %p241
    $region38: #{double_conv_forward.7} parent=5 // pred_check_branch
      %244 = sbr.rel (%p242) target = $region40
    $region39: #{double_conv_forward.7} parent=5 // pred_region
      %s245 = ssub.s32 %s9, 2
      // Predicated region
      $region41: #{double_conv_forward.7} parent=39 // pred_check
        %p246 = pneg %p122
      $region42: #{double_conv_forward.7} parent=39 // pred_check_branch
        %248 = sbr.rel (%p246) target = $region44
      $region43: #{double_conv_forward.7} parent=39 // pred_region
        %s249 = smul.u32 2, %s21
        %p250 = scmp.lt.s32.totalorder %s20, 1
        %s251 = scalar_select %p250, %s20, 1
        %p252 = scmp.lt.s32.totalorder %s249, 1
        %s253 = scalar_select %p252, %s249, 1
        %s254 = smul.addr %s251, 2
        %s255 = sadd.s32 %s253, %s254
        %s256 = smul.addr %s255, 8
        %s257 = scalar_lea.vmem %s3, %s256
      $region44: #{double_conv_forward.7} parent=39 // pred_fallthru
        _
    $region40: #{double_conv_forward.7} parent=5 // pred_fallthru
      _
  $region6: #{double_conv_forward.7} parent=0 // loop_footer
    %s13 = sadd.s32 1, %s9
  $region7: #{double_conv_forward.7} parent=0 // loop_footer_branch
    %8 = sbr.rel target = $region3
  $region8: #{double_conv_forward.7} parent=0 // loop_exit
    _

</llo_original>
